<compile_context>
chip_gen: v7x
topology: tpu7x:2x2x1
jax: 0.10.0
libtpu: 0.0.40
codegen_flags: <defaults>
</compile_context>

<pallas_src>
import jax
import jax.numpy as jnp
from jax.experimental import pallas as pl
from jax.experimental.pallas import tpu as pltpu


def ae_kernel(x_ref, w1_ref, b1_ref, w2_ref, b2_ref, out_ref, z_acc_ref):
    """One (batch-tile, K-tile) grid step. K (encoder reduction) is the last, 'arbitrary' axis."""
    k = pl.program_id(1)

    @pl.when(k == 0)
    def _init():
        z_acc_ref[...] = jnp.zeros_like(z_acc_ref)

    # Encoder partial product: (tm, tk)bf16 @ (tk, H)bf16 -> fp32 accumulation in VMEM scratch.
    z_acc_ref[...] += jnp.dot(x_ref[...], w1_ref[...],
                              preferred_element_type=jnp.float32)

    @pl.when(k == pl.num_programs(1) - 1)
    def _finalize():
        # z = relu(x @ W1 + b1); encoder's auxiliary output is discarded.
        z = jnp.maximum(z_acc_ref[...] + b1_ref[...], 0.0)
        # Decoder: x_hat = z @ W2 + b2. z is explicitly downcast to bf16 for the MXU
        # (documented choice: fp32 accumulation keeps the error at ~bf16 level).
        y = jnp.dot(z.astype(w2_ref.dtype), w2_ref[...],
                    preferred_element_type=jnp.float32) + b2_ref[...]
        out_ref[...] = y.astype(out_ref.dtype)


def _pick_tile(dim, candidates=(512, 256, 128)):
    for t in candidates:
        if dim % t == 0:
            return t
    return dim


def autoencoder_forward(x_nchw, w1, b1, w2, b2, *, tm=128):
    B = x_nchw.shape[0]
    D = 1
    for s in x_nchw.shape[1:]:
        D *= s
    H = w1.shape[1]

    x2d = x_nchw.reshape(B, D)  # glue reshape in plain JAX

    # bf16 operands: half the HBM weight traffic and native MXU rate; fp32 accumulate in-kernel.
    x_bf = x2d.astype(jnp.bfloat16)
    w1_bf = w1.astype(jnp.bfloat16)
    w2_bf = w2.astype(jnp.bfloat16)
    b1_f = b1.astype(jnp.float32).reshape(1, H)
    b2_f = b2.astype(jnp.float32).reshape(1, D)

    # Pad the batch up to a full MXU-row tile so the streamed weights amortize over useful rows.
    Bp = pl.cdiv(B, tm) * tm
    if Bp != B:
        x_bf = jnp.pad(x_bf, ((0, Bp - B), (0, 0)))

    tk = _pick_tile(D)
    grid = (Bp // tm, D // tk)

    flops = 4 * Bp * D * H  # encoder + decoder matmuls
    bytes_accessed = (x_bf.size * 2 + w1_bf.size * 2 + w2_bf.size * 2
                      + b1_f.size * 4 + b2_f.size * 4 + Bp * D * 4)

    out = pl.pallas_call(
        ae_kernel,
        out_shape=jax.ShapeDtypeStruct((Bp, D), jnp.float32),
        grid_spec=pltpu.PrefetchScalarGridSpec(
            num_scalar_prefetch=0,
            grid=grid,
            in_specs=[
                pl.BlockSpec((tm, tk), lambda m, k: (m, k)),   # x: row tile, K-streamed
                pl.BlockSpec((tk, H), lambda m, k: (k, 0)),    # W1: K-streamed
                pl.BlockSpec((1, H), lambda m, k: (0, 0)),     # b1: VMEM-resident
                pl.BlockSpec((H, D), lambda m, k: (0, 0)),     # W2: VMEM-resident
                pl.BlockSpec((1, D), lambda m, k: (0, 0)),     # b2: VMEM-resident
            ],
            out_specs=pl.BlockSpec((tm, D), lambda m, k: (m, 0)),  # resident across K
            scratch_shapes=[pltpu.VMEM((tm, H), jnp.float32)],
        ),
        compiler_params=pltpu.CompilerParams(
            dimension_semantics=("parallel", "arbitrary"),
        ),
        cost_estimate=pl.CostEstimate(
            flops=flops, transcendentals=0, bytes_accessed=bytes_accessed),
    )(x_bf, w1_bf, b1_f, w2_bf, b2_f)

    return out[:B].reshape(x_nchw.shape)


def init_params(key, in_dim, hidden):
    # Deterministic PyTorch-Linear-style init: U(-1/sqrt(fan_in), 1/sqrt(fan_in))
    k1, k2, k3, k4 = jax.random.split(key, 4)
    s1 = 1.0 / jnp.sqrt(in_dim)
    s2 = 1.0 / jnp.sqrt(hidden)
    w1 = jax.random.uniform(k1, (in_dim, hidden), jnp.float32, -s1, s1)
    b1 = jax.random.uniform(k2, (1, hidden), jnp.float32, -s1, s1)
    w2 = jax.random.uniform(k3, (hidden, in_dim), jnp.float32, -s2, s2)
    b2 = jax.random.uniform(k4, (1, in_dim), jnp.float32, -s2, s2)
    return w1, b1, w2, b2


if __name__ == "__main__":
    key = jax.random.PRNGKey(0)
    kx, kp = jax.random.split(key)

    B, C, Hh, Ww = 2, 4, 16, 16          # NCHW input, D = 4*16*16 = 1024
    D = C * Hh * Ww
    HID = 128                            # latent size

    x = jax.random.normal(kx, (B, C, Hh, Ww), jnp.float32)
    w1, b1, w2, b2 = init_params(kp, D, HID)

    y = autoencoder_forward(x, w1, b1, w2, b2)
    jax.block_until_ready(y)

    # reference check (plain JAX, same bf16-operand / fp32-accumulate recipe)
    x2d = x.reshape(B, D)
    xb = x2d.astype(jnp.bfloat16)
    z_ref = jnp.maximum(
        jnp.dot(xb, w1.astype(jnp.bfloat16), preferred_element_type=jnp.float32) + b1, 0.0)
    y_ref = (jnp.dot(z_ref.astype(jnp.bfloat16), w2.astype(jnp.bfloat16),
                     preferred_element_type=jnp.float32) + b2).reshape(x.shape)

    assert y.shape == x.shape
    assert jnp.allclose(y, y_ref, atol=1e-2, rtol=1e-2)

    print("KERNEL_OK")
</pallas_src>

<mosaic_0001>
module attributes {stable_mosaic.version = 11 : i64} {
  func.func @ae_kernel(%arg0: i32, %arg1: i32, %arg2: memref<128x512xbf16, #tpu.memory_space<vmem>>, %arg3: memref<512x128xbf16, #tpu.memory_space<vmem>>, %arg4: memref<1x128xf32, #tpu.memory_space<vmem>>, %arg5: memref<128x1024xbf16, #tpu.memory_space<vmem>>, %arg6: memref<1x1024xf32, #tpu.memory_space<vmem>>, %arg7: memref<128x1024xf32, #tpu.memory_space<vmem>>, %arg8: memref<128x128xf32, #tpu.memory_space<vmem>>) attributes {dimension_semantics = [#tpu.dimension_semantics<parallel>, #tpu.dimension_semantics<arbitrary>], iteration_bounds = array<i64: 1, 2>, scalar_prefetch = 0 : i64, scratch_operands = 1 : i64, tpu.core_type = #tpu.core_type<tc>, window_params = [{transform_indices = @transform_0, window_bounds = array<i64: 128, 512>}, {transform_indices = @transform_1, window_bounds = array<i64: 512, 128>}, {pipeline_mode = #tpu.pipeline_mode<synchronous>, transform_indices = @transform_2, window_bounds = array<i64: 1, 128>}, {pipeline_mode = #tpu.pipeline_mode<synchronous>, transform_indices = @transform_3, window_bounds = array<i64: 128, 1024>}, {pipeline_mode = #tpu.pipeline_mode<synchronous>, transform_indices = @transform_4, window_bounds = array<i64: 1, 1024>}, {transform_indices = @transform_5, window_bounds = array<i64: 128, 1024>}]} {
    %c0_i32 = arith.constant 0 : i32
    %0 = arith.cmpi eq, %arg1, %c0_i32 : i32
    %1 = arith.extui %0 : i1 to i32
    %c0_i32_0 = arith.constant 0 : i32
    %2 = arith.cmpi ne, %1, %c0_i32_0 : i32
    scf.if %2 {
      %cst_9 = arith.constant 0.000000e+00 : f32
      %12 = vector.broadcast %cst_9 : f32 to vector<128x128xf32>
      %c0_10 = arith.constant 0 : index
      %c0_11 = arith.constant 0 : index
      %13 = vector.load %arg8[%c0_10, %c0_11] : memref<128x128xf32, #tpu.memory_space<vmem>>, vector<128x128xf32>
      tpu.vector_store %arg8[%c0_10, %c0_11], %12 {strides = array<i32>} : memref<128x128xf32, #tpu.memory_space<vmem>>, vector<128x128xf32>,
    } else {
    }
    %c0 = arith.constant 0 : index
    %c0_1 = arith.constant 0 : index
    %3 = vector.load %arg8[%c0, %c0_1] : memref<128x128xf32, #tpu.memory_space<vmem>>, vector<128x128xf32>
    %c0_2 = arith.constant 0 : index
    %c0_3 = arith.constant 0 : index
    %4 = vector.load %arg2[%c0_2, %c0_3] : memref<128x512xbf16, #tpu.memory_space<vmem>>, vector<128x512xbf16>
    %c0_4 = arith.constant 0 : index
    %c0_5 = arith.constant 0 : index
    %5 = vector.load %arg3[%c0_4, %c0_5] : memref<512x128xbf16, #tpu.memory_space<vmem>>, vector<512x128xbf16>
    %cst = arith.constant dense<0.000000e+00> : vector<128x128xf32>
    %6 = tpu.matmul %4, %5, %cst {dimension_numbers = #tpu.dot_dimension_numbers<[1], [0], [0], [1], [0, 0, 1, 1], [], []>} : vector<128x512xbf16>, vector<512x128xbf16>, vector<128x128xf32> -> vector<128x128xf32>
    %7 = arith.addf %3, %6 : vector<128x128xf32>
    %c0_6 = arith.constant 0 : index
    %c0_7 = arith.constant 0 : index
    %8 = vector.load %arg8[%c0_6, %c0_7] : memref<128x128xf32, #tpu.memory_space<vmem>>, vector<128x128xf32>
    tpu.vector_store %arg8[%c0_6, %c0_7], %7 {strides = array<i32>} : memref<128x128xf32, #tpu.memory_space<vmem>>, vector<128x128xf32>,
    %c1_i32 = arith.constant 1 : i32
    %9 = arith.cmpi eq, %arg1, %c1_i32 : i32
    %10 = arith.extui %9 : i1 to i32
    %c0_i32_8 = arith.constant 0 : i32
    %11 = arith.cmpi ne, %10, %c0_i32_8 : i32
    scf.if %11 {
      %c0_9 = arith.constant 0 : index
      %c0_10 = arith.constant 0 : index
      %12 = vector.load %arg8[%c0_9, %c0_10] : memref<128x128xf32, #tpu.memory_space<vmem>>, vector<128x128xf32>
      %c0_11 = arith.constant 0 : index
      %c0_12 = arith.constant 0 : index
      %13 = vector.load %arg4[%c0_11, %c0_12] : memref<1x128xf32, #tpu.memory_space<vmem>>, vector<1x128xf32>
      %14 = vector.broadcast %13 : vector<1x128xf32> to vector<128x128xf32>
      %15 = arith.addf %12, %14 : vector<128x128xf32>
      %cst_13 = arith.constant 0.000000e+00 : f32
      %16 = vector.broadcast %cst_13 : f32 to vector<128x128xf32>
      %17 = arith.maximumf %15, %16 : vector<128x128xf32>
      %18 = arith.truncf %17 : vector<128x128xf32> to vector<128x128xbf16>
      %c0_14 = arith.constant 0 : index
      %c0_15 = arith.constant 0 : index
      %19 = vector.load %arg5[%c0_14, %c0_15] : memref<128x1024xbf16, #tpu.memory_space<vmem>>, vector<128x1024xbf16>
      %cst_16 = arith.constant dense<0.000000e+00> : vector<128x1024xf32>
      %20 = tpu.matmul %18, %19, %cst_16 {dimension_numbers = #tpu.dot_dimension_numbers<[1], [0], [0], [1], [0, 0, 1, 1], [], []>} : vector<128x128xbf16>, vector<128x1024xbf16>, vector<128x1024xf32> -> vector<128x1024xf32>
      %c0_17 = arith.constant 0 : index
      %c0_18 = arith.constant 0 : index
      %21 = vector.load %arg6[%c0_17, %c0_18] : memref<1x1024xf32, #tpu.memory_space<vmem>>, vector<1x1024xf32>
      %22 = vector.broadcast %21 : vector<1x1024xf32> to vector<128x1024xf32>
      %23 = arith.addf %20, %22 : vector<128x1024xf32>
      %c0_19 = arith.constant 0 : index
      %c0_20 = arith.constant 0 : index
      %24 = vector.load %arg7[%c0_19, %c0_20] : memref<128x1024xf32, #tpu.memory_space<vmem>>, vector<128x1024xf32>
      tpu.vector_store %arg7[%c0_19, %c0_20], %23 {strides = array<i32>} : memref<128x1024xf32, #tpu.memory_space<vmem>>, vector<128x1024xf32>,
    } else {
    }
    return
  }
  func.func @transform_0(%arg0: i32, %arg1: i32) -> (i32, i32) {
    %c0_i32 = arith.constant 0 : i32
    return %arg0, %arg1 : i32, i32
  }
  func.func @transform_1(%arg0: i32, %arg1: i32) -> (i32, i32) {
    %c0_i32 = arith.constant 0 : i32
    %c0_i32_0 = arith.constant 0 : i32
    return %arg1, %c0_i32 : i32, i32
  }
  func.func @transform_2(%arg0: i32, %arg1: i32) -> (i32, i32) {
    %c0_i32 = arith.constant 0 : i32
    %c0_i32_0 = arith.constant 0 : i32
    %c0_i32_1 = arith.constant 0 : i32
    return %c0_i32, %c0_i32_0 : i32, i32
  }
  func.func @transform_3(%arg0: i32, %arg1: i32) -> (i32, i32) {
    %c0_i32 = arith.constant 0 : i32
    %c0_i32_0 = arith.constant 0 : i32
    %c0_i32_1 = arith.constant 0 : i32
    return %c0_i32, %c0_i32_0 : i32, i32
  }
  func.func @transform_4(%arg0: i32, %arg1: i32) -> (i32, i32) {
    %c0_i32 = arith.constant 0 : i32
    %c0_i32_0 = arith.constant 0 : i32
    %c0_i32_1 = arith.constant 0 : i32
    return %c0_i32, %c0_i32_0 : i32, i32
  }
  func.func @transform_5(%arg0: i32, %arg1: i32) -> (i32, i32) {
    %c0_i32 = arith.constant 0 : i32
    %c0_i32_0 = arith.constant 0 : i32
    return %arg0, %c0_i32 : i32, i32
  }
}

</mosaic_0001>

<llo_original>
// kernel: tpu_custom_call.1
$region0: #{tpu_custom_call.1}
  #allocation0 [shape = 'u32[]', space=smem, size = 0x4, offset = 0x4, fixed_abs, tag = 'smem constant byte address 0x4 - core index']
  #allocation1 [shape = 'u32[144,128]{1,0:T(1,128)}', space=vmem, size = 0x12000, scoped, tag = 'internal scratch']
  #allocation2 [shape = 'f32[128,128]{1,0:T(8,128)}', space=vmem, size = 0x10000, scoped, tag = 'scratch operand']
  %s0 = inlined_call_operand.hbm [shape: bf16[128,1024], index: 0, kind: input, shape index: {}]
  %s1 = inlined_call_operand.hbm [shape: bf16[1024,128], index: 1, kind: input, shape index: {}]
  %s2 = inlined_call_operand.vmem [shape: f32[1,128], index: 2, kind: input, shape index: {}]
  %s3 = inlined_call_operand.hbm [shape: bf16[128,1024], index: 3, kind: input, shape index: {}]
  %s4 = inlined_call_operand.vmem [shape: f32[1,1024], index: 4, kind: input, shape index: {}]
  %s5 = inlined_call_operand.hbm [shape: f32[128,1024], index: 5, kind: output, shape index: {}]
  %s6 = sld [smem:[#allocation0]]
  $region73: #{tpu_custom_call.1} parent=0
    _
  %s8 = ssub.s32 1, %s6
  %s9 = scalar_select 0, %s8, %s6
  $region1: #{tpu_custom_call.1} parent=0
    #allocation3 [shape = 'u8[262144]{0}', space=vmem, size = 0x40000, scoped, tag = 'input window, operand 0']
    #allocation4 [shape = 's32[2]{0}', space=sflag, size = 0x8, scoped, tag = 'scoped memory for tpu_custom_call.1']
    #allocation5 [shape = 's32[2]{0}', space=sflag, size = 0x8, scoped, tag = 'scoped memory for tpu_custom_call.1']
    #allocation6 [shape = 'u8[262144]{0}', space=vmem, size = 0x40000, scoped, tag = 'input window, operand 1']
    #allocation7 [shape = 's32[2]{0}', space=sflag, size = 0x8, scoped, tag = 'scoped memory for tpu_custom_call.1']
    #allocation8 [shape = 'u8[262144]{0}', space=vmem, size = 0x40000, scoped, tag = 'input window, operand 3, single buffered']
    #allocation9 [shape = 'u8[524288]{0}', space=vmem, size = 0x80000, scoped, tag = 'output window, operand 0, single buffered']
    %10 = vsyncpa [#allocation4], 0
    %s11 = scalar_lea.sflag [#allocation4], 1
    %12 = vsyncpa %s11, 0
    %13 = vsyncpa [#allocation7], 0
    %s14 = scalar_lea.sflag [#allocation7], 1
    %15 = vsyncpa %s14, 0
    %16 = vsyncpa [#allocation5], 0
    loop: start=0, step=1, limit=4
    $region2: #{tpu_custom_call.1} parent=1 // loop_pre_header
      _
    $region3: #{tpu_custom_call.1} parent=1 // loop_header
      %s18 = sphi 0, %s22
      %p19 = scmp.ge.s32.totalorder %s18, 4
      %s25 = sphi 0, %s37
      %s26 = sphi 0, %s33
      %s27 = sphi 0, %s25
      %s28 = sphi 0, %s26
      %s29 = sphi 0, %s27
      %s30 = sphi 0, %s28
      %s42 = sphi 0, %s44
      %s45 = sphi 0, %s42
      %s46 = sphi 0, %s45
      %s62 = sphi 0, %s46
      %s68 = sphi 0, %s70
      %s71 = sphi 0, %s68
      %s72 = sphi 0, %s71
      %s88 = sphi 0, %s72
      %s92 = sphi 0, %s92
      %s94 = sphi 0, %s92
      %s95 = sphi 0, %s94
      %s109 = sphi 0, %s95
      %s113 = sphi 0, %s113
      %s115 = sphi 0, %s113
      %s116 = sphi 0, %s115
      %s130 = sphi 0, %s116
      %s134 = sphi 0, %s134
      %s136 = sphi 0, %s134
      %s137 = sphi 0, %s136
      %s151 = sphi 0, %s137
      %s157 = sphi 0, %s159
      %s160 = sphi 0, %s157
      %s161 = sphi 0, %s160
      %s177 = sphi 0, %s161
    $region4: #{tpu_custom_call.1} parent=1 // loop_header_branch
      %21 = sbr.rel (%p19) target = $region8
    $region5: #{tpu_custom_call.1} parent=1 // loop_body
      %s23 = ssub.s32 %s18, 1
      %s24 = ssub.s32 %s18, 2
      %s31 = sadd.s32 1, %s26
      %p32 = scmp.ge.s32.totalorder %s31, 2
      %s33 = scalar_select %p32, 0, %s31
      %s34 = sadd.s32 1, %s25
      %s35 = scalar_select %p32, %s34, %s25
      %p36 = scmp.ge.s32.totalorder %s35, 1
      %s37 = scalar_select %p36, 0, %s35
      %s38 = ssub.s32 %s25, %s37
      %s39 = ssub.s32 %s26, %s33
      %s40 = sor.u32 %s38, %s39
      %p41 = scmp.eq.s32.totalorder %s40, 0
      %s43 = sadd.s32 %s42, 1
      %s44 = scalar_select %p41, %s42, %s43
      %p47 = pneg %p41
      %p48 = scmp.eq.s32.totalorder %s18, 1
      %p49 = por %p47, %p48
      %p50 = scmp.ne.s32.totalorder %s42, %s45
      %p51 = scmp.eq.s32.totalorder %s18, 0
      %p52 = por %p50, %p51
      %p53 = scmp.ne.s32.totalorder %s42, %s45
      %p54 = scmp.eq.s32.totalorder %s23, 1
      %p55 = por %p53, %p54
      %p56 = scmp.ne.s32.totalorder %s45, %s46
      %p57 = scmp.eq.s32.totalorder %s23, 0
      %p58 = por %p56, %p57
      %p59 = scmp.ne.s32.totalorder %s45, %s46
      %p60 = scmp.eq.s32.totalorder %s24, 1
      %p61 = por %p59, %p60
      %p63 = scmp.ne.s32.totalorder %s46, %s62
      %p64 = scmp.eq.s32.totalorder %s24, 0
      %p65 = por %p63, %p64
      %s66 = ssub.s32 %s26, %s33
      %p67 = scmp.eq.s32.totalorder %s66, 0
      %s69 = sadd.s32 %s68, 1
      %s70 = scalar_select %p67, %s68, %s69
      %p73 = pneg %p67
      %p74 = scmp.eq.s32.totalorder %s18, 1
      %p75 = por %p73, %p74
      %p76 = scmp.ne.s32.totalorder %s68, %s71
      %p77 = scmp.eq.s32.totalorder %s18, 0
      %p78 = por %p76, %p77
      %p79 = scmp.ne.s32.totalorder %s68, %s71
      %p80 = scmp.eq.s32.totalorder %s23, 1
      %p81 = por %p79, %p80
      %p82 = scmp.ne.s32.totalorder %s71, %s72
      %p83 = scmp.eq.s32.totalorder %s23, 0
      %p84 = por %p82, %p83
      %p85 = scmp.ne.s32.totalorder %s71, %s72
      %p86 = scmp.eq.s32.totalorder %s24, 1
      %p87 = por %p85, %p86
      %p89 = scmp.ne.s32.totalorder %s72, %s88
      %p90 = scmp.eq.s32.totalorder %s24, 0
      %p91 = por %p89, %p90
      %s93 = sadd.s32 %s92, 1
      %p96 = scmp.eq.s32.totalorder %s18, 1
      %p97 = scmp.ne.s32.totalorder %s92, %s94
      %p98 = scmp.eq.s32.totalorder %s18, 0
      %p99 = por %p97, %p98
      %p100 = scmp.ne.s32.totalorder %s92, %s94
      %p101 = scmp.eq.s32.totalorder %s23, 1
      %p102 = por %p100, %p101
      %p103 = scmp.ne.s32.totalorder %s94, %s95
      %p104 = scmp.eq.s32.totalorder %s23, 0
      %p105 = por %p103, %p104
      %p106 = scmp.ne.s32.totalorder %s94, %s95
      %p107 = scmp.eq.s32.totalorder %s24, 1
      %p108 = por %p106, %p107
      %p110 = scmp.ne.s32.totalorder %s95, %s109
      %p111 = scmp.eq.s32.totalorder %s24, 0
      %p112 = por %p110, %p111
      %s114 = sadd.s32 %s113, 1
      %p117 = scmp.eq.s32.totalorder %s18, 1
      %p118 = scmp.ne.s32.totalorder %s113, %s115
      %p119 = scmp.eq.s32.totalorder %s18, 0
      %p120 = por %p118, %p119
      %p121 = scmp.ne.s32.totalorder %s113, %s115
      %p122 = scmp.eq.s32.totalorder %s23, 1
      %p123 = por %p121, %p122
      %p124 = scmp.ne.s32.totalorder %s115, %s116
      %p125 = scmp.eq.s32.totalorder %s23, 0
      %p126 = por %p124, %p125
      %p127 = scmp.ne.s32.totalorder %s115, %s116
      %p128 = scmp.eq.s32.totalorder %s24, 1
      %p129 = por %p127, %p128
      %p131 = scmp.ne.s32.totalorder %s116, %s130
      %p132 = scmp.eq.s32.totalorder %s24, 0
      %p133 = por %p131, %p132
      %s135 = sadd.s32 %s134, 1
      %p138 = scmp.eq.s32.totalorder %s18, 1
      %p139 = scmp.ne.s32.totalorder %s134, %s136
      %p140 = scmp.eq.s32.totalorder %s18, 0
      %p141 = por %p139, %p140
      %p142 = scmp.ne.s32.totalorder %s134, %s136
      %p143 = scmp.eq.s32.totalorder %s23, 1
      %p144 = por %p142, %p143
      %p145 = scmp.ne.s32.totalorder %s136, %s137
      %p146 = scmp.eq.s32.totalorder %s23, 0
      %p147 = por %p145, %p146
      %p148 = scmp.ne.s32.totalorder %s136, %s137
      %p149 = scmp.eq.s32.totalorder %s24, 1
      %p150 = por %p148, %p149
      %p152 = scmp.ne.s32.totalorder %s137, %s151
      %p153 = scmp.eq.s32.totalorder %s24, 0
      %p154 = por %p152, %p153
      %s155 = ssub.s32 %s25, %s37
      %p156 = scmp.eq.s32.totalorder %s155, 0
      %s158 = sadd.s32 %s157, 1
      %s159 = scalar_select %p156, %s157, %s158
      %p162 = pneg %p156
      %p163 = scmp.eq.s32.totalorder %s18, 1
      %p164 = por %p162, %p163
      %p165 = scmp.ne.s32.totalorder %s157, %s160
      %p166 = scmp.eq.s32.totalorder %s18, 0
      %p167 = por %p165, %p166
      %p168 = scmp.ne.s32.totalorder %s157, %s160
      %p169 = scmp.eq.s32.totalorder %s23, 1
      %p170 = por %p168, %p169
      %p171 = scmp.ne.s32.totalorder %s160, %s161
      %p172 = scmp.eq.s32.totalorder %s23, 0
      %p173 = por %p171, %p172
      %p174 = scmp.ne.s32.totalorder %s160, %s161
      %p175 = scmp.eq.s32.totalorder %s24, 1
      %p176 = por %p174, %p175
      %p178 = scmp.ne.s32.totalorder %s161, %s177
      %p179 = scmp.eq.s32.totalorder %s24, 0
      %p180 = por %p178, %p179
      %p181 = scmp.le.s32.totalorder 1, %s18
      %p182 = scmp.lt.s32.totalorder %s18, 3
      %p183 = pnand %p181, %p182
      %p184 = pneg %p183
      // Predicated region
      $region9: #{tpu_custom_call.1} parent=5 // pred_check
        _
      $region10: #{tpu_custom_call.1} parent=5 // pred_check_branch
        %186 = sbr.rel (%p183) target = $region12
      $region11: #{tpu_custom_call.1} parent=5 // pred_region
        %s187 = ssub.s32 %s18, 1
        // Predicated region
        $region13: #{tpu_custom_call.1} parent=11 // pred_check
          %p188 = pneg %p105
        $region14: #{tpu_custom_call.1} parent=11 // pred_check_branch
          %190 = sbr.rel (%p188) target = $region16
        $region15: #{tpu_custom_call.1} parent=11 // pred_region
          _
        $region16: #{tpu_custom_call.1} parent=11 // pred_fallthru
          _
        // Predicated region
        $region17: #{tpu_custom_call.1} parent=11 // pred_check
          %p191 = pneg %p126
        $region18: #{tpu_custom_call.1} parent=11 // pred_check_branch
          %193 = sbr.rel (%p191) target = $region20
        $region19: #{tpu_custom_call.1} parent=11 // pred_region
          %s195 = ssub.s32 8192, 8192
          %196 = vsyncadd [#allocation7], %s195
          %s197 = sshll.u32 [#allocation8], 4
          %s198 = int_to_ptr.vmem [resolvable:$true] %s197
          %203 = dma.hbm_to_vmem [thread:$0]  %s3, 8192, %s198, [#allocation7], 512, 512, 32
        $region20: #{tpu_custom_call.1} parent=11 // pred_fallthru
          _
        // Predicated region
        $region21: #{tpu_custom_call.1} parent=11 // pred_check
          %p204 = pneg %p147
        $region22: #{tpu_custom_call.1} parent=11 // pred_check_branch
          %206 = sbr.rel (%p204) target = $region24
        $region23: #{tpu_custom_call.1} parent=11 // pred_region
          _
        $region24: #{tpu_custom_call.1} parent=11 // pred_fallthru
          _
      $region12: #{tpu_custom_call.1} parent=5 // pred_fallthru
        _
      %p207 = scmp.lt.s32.totalorder %s18, 2
      // Predicated region
      $region25: #{tpu_custom_call.1} parent=5 // pred_check
        %p208 = pneg %p207
      $region26: #{tpu_custom_call.1} parent=5 // pred_check_branch
        %210 = sbr.rel (%p208) target = $region28
      $region27: #{tpu_custom_call.1} parent=5 // pred_region
        // Predicated region
        $region29: #{tpu_custom_call.1} parent=27 // pred_check
          %p211 = pneg %p52
        $region30: #{tpu_custom_call.1} parent=27 // pred_check_branch
          %213 = sbr.rel (%p211) target = $region32
        $region31: #{tpu_custom_call.1} parent=27 // pred_region
          %s214 = sand.u32 %s42, 1
          %s215 = scalar_lea.sflag [#allocation4], %s214
          %s216 = sand.u32 %s42, 1
          %s217 = smul.addr %s216, 256
          %s218 = scalar_lea.vmem [#allocation3], %s217
          %s219 = smul.u32 16, %s25
          %s220 = smul.u32 4, %s26
          %s222 = ssub.s32 4096, 4096
          %223 = vsyncadd %s215, %s222
          %s224 = smul.addr %s219, 8
          %s225 = sadd.s32 %s220, %s224
          %s226 = smul.addr %s225, 64
          %s227 = scalar_lea.hbm %s0, %s226
          %s228 = sshll.u32 %s218, 4
          %s229 = int_to_ptr.vmem [resolvable:$true] %s228
          %234 = dma.hbm_to_vmem [thread:$0]  %s227, 4096, %s229, %s215, 512, 256, 16
        $region32: #{tpu_custom_call.1} parent=27 // pred_fallthru
          _
        // Predicated region
        $region33: #{tpu_custom_call.1} parent=27 // pred_check
          %p235 = pneg %p78
        $region34: #{tpu_custom_call.1} parent=27 // pred_check_branch
          %237 = sbr.rel (%p235) target = $region36
        $region35: #{tpu_custom_call.1} parent=27 // pred_region
          %s238 = sand.u32 %s18, 1
          %s239 = scalar_lea.sflag [#allocation7], %s238
          %s240 = sand.u32 %s68, 1
          %s241 = smul.addr %s240, 256
          %s242 = scalar_lea.vmem [#allocation6], %s241
          %s243 = smul.u32 64, %s26
          %s245 = ssub.s32 4096, 4096
          %246 = vsyncadd %s239, %s245
          %s247 = smul.addr %s243, 64
          %s248 = scalar_lea.hbm %s1, %s247
          %s249 = sshll.u32 %s242, 4
          %s250 = int_to_ptr.vmem [resolvable:$true] %s249
          %255 = dma.hbm_to_vmem [thread:$0]  %s248, 4096, %s250, %s239, 64, 64, 4
        $region36: #{tpu_custom_call.1} parent=27 // pred_fallthru
          _
      $region28: #{tpu_custom_call.1} parent=5 // pred_fallthru
        _
      %p256 = scmp.le.s32.totalorder 1, %s18
      %p257 = scmp.lt.s32.totalorder %s18, 3
      %p258 = pnand %p256, %p257
      %p259 = pneg %p258
      // Predicated region
      $region37: #{tpu_custom_call.1} parent=5 // pred_check
        _
      $region38: #{tpu_custom_call.1} parent=5 // pred_check_branch
        %261 = sbr.rel (%p258) target = $region40
      $region39: #{tpu_custom_call.1} parent=5 // pred_region
        %s262 = ssub.s32 %s18, 1
        %s263 = sand.u32 %s45, 1
        %s264 = scalar_lea.sflag [#allocation4], %s263
        %s265 = sand.u32 %s45, 1
        %s266 = smul.addr %s265, 256
        %s267 = scalar_lea.vmem [#allocation3], %s266
        // Predicated region
        $region41: #{tpu_custom_call.1} parent=39 // pred_check
          %p268 = pneg %p58
        $region42: #{tpu_custom_call.1} parent=39 // pred_check_branch
          %270 = sbr.rel (%p268) target = $region44
        $region43: #{tpu_custom_call.1} parent=39 // pred_region
          %271 = dma.done %s264, 4096
        $region44: #{tpu_custom_call.1} parent=39 // pred_fallthru
          _
        %s272 = sand.u32 %s23, 1
        %s273 = scalar_lea.sflag [#allocation7], %s272
        %s274 = sand.u32 %s71, 1
        %s275 = smul.addr %s274, 256
        %s276 = scalar_lea.vmem [#allocation6], %s275
        // Predicated region
        $region45: #{tpu_custom_call.1} parent=39 // pred_check
          %p277 = pneg %p84
        $region46: #{tpu_custom_call.1} parent=39 // pred_check_branch
          %279 = sbr.rel (%p277) target = $region48
        $region47: #{tpu_custom_call.1} parent=39 // pred_region
          %280 = dma.done %s273, 4096
        $region48: #{tpu_custom_call.1} parent=39 // pred_fallthru
          _
        // Predicated region
        $region49: #{tpu_custom_call.1} parent=39 // pred_check
          %p281 = pneg %p126
        $region50: #{tpu_custom_call.1} parent=39 // pred_check_branch
          %283 = sbr.rel (%p281) target = $region52
        $region51: #{tpu_custom_call.1} parent=39 // pred_region
          %284 = dma.done [#allocation7], 8192
        $region52: #{tpu_custom_call.1} parent=39 // pred_fallthru
          _
        %s285 = sand.u32 %s45, 1
        %s286 = scalar_lea.sflag [#allocation4], %s285
        %s287 = sand.u32 %s45, 1
        %s288 = smul.addr %s287, 256
        %s289 = scalar_lea.vmem [#allocation3], %s288
        %p290 = pneg %p58
        %p291 = pneg %p55
        %s292 = sand.u32 %s23, 1
        %s293 = scalar_lea.sflag [#allocation7], %s292
        %s294 = sand.u32 %s71, 1
        %s295 = smul.addr %s294, 256
        %s296 = scalar_lea.vmem [#allocation6], %s295
        %p297 = pneg %p84
        %p298 = pneg %p81
        %p299 = pneg %p105
        %p300 = pneg %p102
        %p301 = pneg %p126
        %p302 = pneg %p123
        %p303 = pneg %p147
        %p304 = pneg %p144
        %p305 = pneg %p173
        %p306 = pneg %p170
        %s307 = smul.u32 16, %s27
        %s308 = smul.u32 4, %s28
        %s309 = smul.u32 64, %s28
        %s310 = smul.u32 16, %s27
        %p312 = scmp.eq.s32.totalorder %s28, 0
        // Predicated region
        $region53: #{tpu_custom_call.1} parent=39 // pred_check
          %p313 = pneg %p312
        $region54: #{tpu_custom_call.1} parent=39 // pred_check_branch
          %315 = sbr.rel (%p313) target = $region56
        $region55: #{tpu_custom_call.1} parent=39 // pred_region
          %316 = vst [vmem:[#allocation2] sm:$0xff] 0.0
          %317 = vst [vmem:[#allocation2 + $0x8] sm:$0xff] 0.0
          %318 = vst [vmem:[#allocation2 + $0x10] sm:$0xff] 0.0
          %319 = vst [vmem:[#allocation2 + $0x18] sm:$0xff] 0.0
          %320 = vst [vmem:[#allocation2 + $0x20] sm:$0xff] 0.0
          %321 = vst [vmem:[#allocation2 + $0x28] sm:$0xff] 0.0
          %322 = vst [vmem:[#allocation2 + $0x30] sm:$0xff] 0.0
          %323 = vst [vmem:[#allocation2 + $0x38] sm:$0xff] 0.0
          %324 = vst [vmem:[#allocation2 + $0x40] sm:$0xff] 0.0
          %325 = vst [vmem:[#allocation2 + $0x48] sm:$0xff] 0.0
          %326 = vst [vmem:[#allocation2 + $0x50] sm:$0xff] 0.0
          %327 = vst [vmem:[#allocation2 + $0x58] sm:$0xff] 0.0
          %328 = vst [vmem:[#allocation2 + $0x60] sm:$0xff] 0.0
          %329 = vst [vmem:[#allocation2 + $0x68] sm:$0xff] 0.0
          %330 = vst [vmem:[#allocation2 + $0x70] sm:$0xff] 0.0
          %331 = vst [vmem:[#allocation2 + $0x78] sm:$0xff] 0.0
        $region56: #{tpu_custom_call.1} parent=39 // pred_fallthru
          _
        %v332 = vld [vmem:[#allocation2] sm:$0xff]
        %v333 = vld [vmem:[#allocation2 + $0x8] sm:$0xff]
        %v334 = vld [vmem:[#allocation2 + $0x10] sm:$0xff]
        %v335 = vld [vmem:[#allocation2 + $0x18] sm:$0xff]
        %v336 = vld [vmem:[#allocation2 + $0x20] sm:$0xff]
        %v337 = vld [vmem:[#allocation2 + $0x28] sm:$0xff]
        %v338 = vld [vmem:[#allocation2 + $0x30] sm:$0xff]
        %v339 = vld [vmem:[#allocation2 + $0x38] sm:$0xff]
        %v340 = vld [vmem:[#allocation2 + $0x40] sm:$0xff]
        %v341 = vld [vmem:[#allocation2 + $0x48] sm:$0xff]
        %v342 = vld [vmem:[#allocation2 + $0x50] sm:$0xff]
        %v343 = vld [vmem:[#allocation2 + $0x58] sm:$0xff]
        %v344 = vld [vmem:[#allocation2 + $0x60] sm:$0xff]
        %v345 = vld [vmem:[#allocation2 + $0x68] sm:$0xff]
        %v346 = vld [vmem:[#allocation2 + $0x70] sm:$0xff]
        %v347 = vld [vmem:[#allocation2 + $0x78] sm:$0xff]
        %v348 = vld [vmem:[%s267] sm:$0xff]
        %v349 = vld [vmem:[%s267 + $0x8] sm:$0xff]
        %v350 = vld [vmem:[%s267 + $0x10] sm:$0xff]
        %v351 = vld [vmem:[%s267 + $0x18] sm:$0xff]
        %v352 = vld [vmem:[%s267 + $0x20] sm:$0xff]
        %v353 = vld [vmem:[%s267 + $0x28] sm:$0xff]
        %v354 = vld [vmem:[%s267 + $0x30] sm:$0xff]
        %v355 = vld [vmem:[%s267 + $0x38] sm:$0xff]
        %v356 = vld [vmem:[%s267 + $0x40] sm:$0xff]
        %v357 = vld [vmem:[%s267 + $0x48] sm:$0xff]
        %v358 = vld [vmem:[%s267 + $0x50] sm:$0xff]
        %v359 = vld [vmem:[%s267 + $0x58] sm:$0xff]
        %v360 = vld [vmem:[%s267 + $0x60] sm:$0xff]
        %v361 = vld [vmem:[%s267 + $0x68] sm:$0xff]
        %v362 = vld [vmem:[%s267 + $0x70] sm:$0xff]
        %v363 = vld [vmem:[%s267 + $0x78] sm:$0xff]
        %v364 = vld [vmem:[%s267 + $0x80] sm:$0xff]
        %v365 = vld [vmem:[%s267 + $0x88] sm:$0xff]
        %v366 = vld [vmem:[%s267 + $0x90] sm:$0xff]
        %v367 = vld [vmem:[%s267 + $0x98] sm:$0xff]
        %v368 = vld [vmem:[%s267 + $0xa0] sm:$0xff]
        %v369 = vld [vmem:[%s267 + $0xa8] sm:$0xff]
        %v370 = vld [vmem:[%s267 + $0xb0] sm:$0xff]
        %v371 = vld [vmem:[%s267 + $0xb8] sm:$0xff]
        %v372 = vld [vmem:[%s267 + $0xc0] sm:$0xff]
        %v373 = vld [vmem:[%s267 + $0xc8] sm:$0xff]
        %v374 = vld [vmem:[%s267 + $0xd0] sm:$0xff]
        %v375 = vld [vmem:[%s267 + $0xd8] sm:$0xff]
        %v376 = vld [vmem:[%s267 + $0xe0] sm:$0xff]
        %v377 = vld [vmem:[%s267 + $0xe8] sm:$0xff]
        %v378 = vld [vmem:[%s267 + $0xf0] sm:$0xff]
        %v379 = vld [vmem:[%s267 + $0xf8] sm:$0xff]
        %v380 = vld [vmem:[%s276] sm:$0xf]
        %v381 = vld [vmem:[%s276 + $0x4] sm:$0xf]
        %v382 = vld [vmem:[%s276 + $0x8] sm:$0xf]
        %v383 = vld [vmem:[%s276 + $0xc] sm:$0xf]
        %v384 = vld [vmem:[%s276 + $0x10] sm:$0xf]
        %v385 = vld [vmem:[%s276 + $0x14] sm:$0xf]
        %v386 = vld [vmem:[%s276 + $0x18] sm:$0xf]
        %v387 = vld [vmem:[%s276 + $0x1c] sm:$0xf]
        %v388 = vld [vmem:[%s276 + $0x20] sm:$0xf]
        %v389 = vld [vmem:[%s276 + $0x24] sm:$0xf]
        %v390 = vld [vmem:[%s276 + $0x28] sm:$0xf]
        %v391 = vld [vmem:[%s276 + $0x2c] sm:$0xf]
        %v392 = vld [vmem:[%s276 + $0x30] sm:$0xf]
        %v393 = vld [vmem:[%s276 + $0x34] sm:$0xf]
        %v394 = vld [vmem:[%s276 + $0x38] sm:$0xf]
        %v395 = vld [vmem:[%s276 + $0x3c] sm:$0xf]
        %v396 = vld [vmem:[%s276 + $0x40] sm:$0xf]
        %v397 = vld [vmem:[%s276 + $0x44] sm:$0xf]
        %v398 = vld [vmem:[%s276 + $0x48] sm:$0xf]
        %v399 = vld [vmem:[%s276 + $0x4c] sm:$0xf]
        %v400 = vld [vmem:[%s276 + $0x50] sm:$0xf]
        %v401 = vld [vmem:[%s276 + $0x54] sm:$0xf]
        %v402 = vld [vmem:[%s276 + $0x58] sm:$0xf]
        %v403 = vld [vmem:[%s276 + $0x5c] sm:$0xf]
        %v404 = vld [vmem:[%s276 + $0x60] sm:$0xf]
        %v405 = vld [vmem:[%s276 + $0x64] sm:$0xf]
        %v406 = vld [vmem:[%s276 + $0x68] sm:$0xf]
        %v407 = vld [vmem:[%s276 + $0x6c] sm:$0xf]
        %v408 = vld [vmem:[%s276 + $0x70] sm:$0xf]
        %v409 = vld [vmem:[%s276 + $0x74] sm:$0xf]
        %v410 = vld [vmem:[%s276 + $0x78] sm:$0xf]
        %v411 = vld [vmem:[%s276 + $0x7c] sm:$0xf]
        %v412 = vld [vmem:[%s276 + $0x80] sm:$0xf]
        %v413 = vld [vmem:[%s276 + $0x84] sm:$0xf]
        %v414 = vld [vmem:[%s276 + $0x88] sm:$0xf]
        %v415 = vld [vmem:[%s276 + $0x8c] sm:$0xf]
        %v416 = vld [vmem:[%s276 + $0x90] sm:$0xf]
        %v417 = vld [vmem:[%s276 + $0x94] sm:$0xf]
        %v418 = vld [vmem:[%s276 + $0x98] sm:$0xf]
        %v419 = vld [vmem:[%s276 + $0x9c] sm:$0xf]
        %v420 = vld [vmem:[%s276 + $0xa0] sm:$0xf]
        %v421 = vld [vmem:[%s276 + $0xa4] sm:$0xf]
        %v422 = vld [vmem:[%s276 + $0xa8] sm:$0xf]
        %v423 = vld [vmem:[%s276 + $0xac] sm:$0xf]
        %v424 = vld [vmem:[%s276 + $0xb0] sm:$0xf]
        %v425 = vld [vmem:[%s276 + $0xb4] sm:$0xf]
        %v426 = vld [vmem:[%s276 + $0xb8] sm:$0xf]
        %v427 = vld [vmem:[%s276 + $0xbc] sm:$0xf]
        %v428 = vld [vmem:[%s276 + $0xc0] sm:$0xf]
        %v429 = vld [vmem:[%s276 + $0xc4] sm:$0xf]
        %v430 = vld [vmem:[%s276 + $0xc8] sm:$0xf]
        %v431 = vld [vmem:[%s276 + $0xcc] sm:$0xf]
        %v432 = vld [vmem:[%s276 + $0xd0] sm:$0xf]
        %v433 = vld [vmem:[%s276 + $0xd4] sm:$0xf]
        %v434 = vld [vmem:[%s276 + $0xd8] sm:$0xf]
        %v435 = vld [vmem:[%s276 + $0xdc] sm:$0xf]
        %v436 = vld [vmem:[%s276 + $0xe0] sm:$0xf]
        %v437 = vld [vmem:[%s276 + $0xe4] sm:$0xf]
        %v438 = vld [vmem:[%s276 + $0xe8] sm:$0xf]
        %v439 = vld [vmem:[%s276 + $0xec] sm:$0xf]
        %v440 = vld [vmem:[%s276 + $0xf0] sm:$0xf]
        %v441 = vld [vmem:[%s276 + $0xf4] sm:$0xf]
        %v442 = vld [vmem:[%s276 + $0xf8] sm:$0xf]
        %v443 = vld [vmem:[%s276 + $0xfc] sm:$0xf]
        %v476 = vunpack.c.l.b16 %v348
        %v477 = vunpack.c.h.b16 %v348
        %v478 = vunpack.c.l.b16 %v349
        %v479 = vunpack.c.h.b16 %v349
        %v480 = vunpack.c.l.b16 %v350
        %v481 = vunpack.c.h.b16 %v350
        %v482 = vunpack.c.l.b16 %v351
        %v483 = vunpack.c.h.b16 %v351
        %v484 = vunpack.c.l.b16 %v352
        %v485 = vunpack.c.h.b16 %v352
        %v486 = vunpack.c.l.b16 %v353
        %v487 = vunpack.c.h.b16 %v353
        %v488 = vunpack.c.l.b16 %v354
        %v489 = vunpack.c.h.b16 %v354
        %v490 = vunpack.c.l.b16 %v355
        %v491 = vunpack.c.h.b16 %v355
        %v492 = vunpack.c.l.b16 %v356
        %v493 = vunpack.c.h.b16 %v356
        %v494 = vunpack.c.l.b16 %v357
        %v495 = vunpack.c.h.b16 %v357
        %v496 = vunpack.c.l.b16 %v358
        %v497 = vunpack.c.h.b16 %v358
        %v498 = vunpack.c.l.b16 %v359
        %v499 = vunpack.c.h.b16 %v359
        %v500 = vunpack.c.l.b16 %v360
        %v501 = vunpack.c.h.b16 %v360
        %v502 = vunpack.c.l.b16 %v361
        %v503 = vunpack.c.h.b16 %v361
        %v504 = vunpack.c.l.b16 %v362
        %v505 = vunpack.c.h.b16 %v362
        %v506 = vunpack.c.l.b16 %v363
        %v507 = vunpack.c.h.b16 %v363
        %v508 = vunpack.c.l.b16 %v364
        %v509 = vunpack.c.h.b16 %v364
        %v510 = vunpack.c.l.b16 %v365
        %v511 = vunpack.c.h.b16 %v365
        %v512 = vunpack.c.l.b16 %v366
        %v513 = vunpack.c.h.b16 %v366
        %v514 = vunpack.c.l.b16 %v367
        %v515 = vunpack.c.h.b16 %v367
        %v516 = vunpack.c.l.b16 %v368
        %v517 = vunpack.c.h.b16 %v368
        %v518 = vunpack.c.l.b16 %v369
        %v519 = vunpack.c.h.b16 %v369
        %v520 = vunpack.c.l.b16 %v370
        %v521 = vunpack.c.h.b16 %v370
        %v522 = vunpack.c.l.b16 %v371
        %v523 = vunpack.c.h.b16 %v371
        %v524 = vunpack.c.l.b16 %v372
        %v525 = vunpack.c.h.b16 %v372
        %v526 = vunpack.c.l.b16 %v373
        %v527 = vunpack.c.h.b16 %v373
        %v528 = vunpack.c.l.b16 %v374
        %v529 = vunpack.c.h.b16 %v374
        %v530 = vunpack.c.l.b16 %v375
        %v531 = vunpack.c.h.b16 %v375
        %v532 = vunpack.c.l.b16 %v376
        %v533 = vunpack.c.h.b16 %v376
        %v534 = vunpack.c.l.b16 %v377
        %v535 = vunpack.c.h.b16 %v377
        %v536 = vunpack.c.l.b16 %v378
        %v537 = vunpack.c.h.b16 %v378
        %v538 = vunpack.c.l.b16 %v379
        %v539 = vunpack.c.h.b16 %v379
        %v540 = vpack.c.b16 %v480, %v476
        %v541 = vpack.c.b16 %v481, %v477
        %v542 = vpack.c.b16 %v482, %v478
        %v543 = vpack.c.b16 %v483, %v479
        %v544 = vpack.c.b16 %v488, %v484
        %v545 = vpack.c.b16 %v489, %v485
        %v546 = vpack.c.b16 %v490, %v486
        %v547 = vpack.c.b16 %v491, %v487
        %v548 = vpack.c.b16 %v496, %v492
        %v549 = vpack.c.b16 %v497, %v493
        %v550 = vpack.c.b16 %v498, %v494
        %v551 = vpack.c.b16 %v499, %v495
        %v552 = vpack.c.b16 %v504, %v500
        %v553 = vpack.c.b16 %v505, %v501
        %v554 = vpack.c.b16 %v506, %v502
        %v555 = vpack.c.b16 %v507, %v503
        %v556 = vpack.c.b16 %v512, %v508
        %v557 = vpack.c.b16 %v513, %v509
        %v558 = vpack.c.b16 %v514, %v510
        %v559 = vpack.c.b16 %v515, %v511
        %v560 = vpack.c.b16 %v520, %v516
        %v561 = vpack.c.b16 %v521, %v517
        %v562 = vpack.c.b16 %v522, %v518
        %v563 = vpack.c.b16 %v523, %v519
        %v564 = vpack.c.b16 %v528, %v524
        %v565 = vpack.c.b16 %v529, %v525
        %v566 = vpack.c.b16 %v530, %v526
        %v567 = vpack.c.b16 %v531, %v527
        %v568 = vpack.c.b16 %v536, %v532
        %v569 = vpack.c.b16 %v537, %v533
        %v570 = vpack.c.b16 %v538, %v534
        %v571 = vpack.c.b16 %v539, %v535
        %v668 = vunpack.c.l.b16 %v380
        %v669 = vunpack.c.l.b16 %v381
        %v670 = vunpack.c.l.b16 %v382
        %v671 = vunpack.c.l.b16 %v383
        %v672 = vunpack.c.l.b16 %v384
        %v673 = vunpack.c.l.b16 %v385
        %v674 = vunpack.c.l.b16 %v386
        %v675 = vunpack.c.l.b16 %v387
        %v676 = vunpack.c.l.b16 %v388
        %v677 = vunpack.c.l.b16 %v389
        %v678 = vunpack.c.l.b16 %v390
        %v679 = vunpack.c.l.b16 %v391
        %v680 = vunpack.c.l.b16 %v392
        %v681 = vunpack.c.l.b16 %v393
        %v682 = vunpack.c.l.b16 %v394
        %v683 = vunpack.c.l.b16 %v395
        %v684 = vunpack.c.l.b16 %v396
        %v685 = vunpack.c.l.b16 %v397
        %v686 = vunpack.c.l.b16 %v398
        %v687 = vunpack.c.l.b16 %v399
        %v688 = vunpack.c.l.b16 %v400
        %v689 = vunpack.c.l.b16 %v401
        %v690 = vunpack.c.l.b16 %v402
        %v691 = vunpack.c.l.b16 %v403
        %v692 = vunpack.c.l.b16 %v404
        %v693 = vunpack.c.l.b16 %v405
        %v694 = vunpack.c.l.b16 %v406
        %v695 = vunpack.c.l.b16 %v407
        %v696 = vunpack.c.l.b16 %v408
        %v697 = vunpack.c.l.b16 %v409
        %v698 = vunpack.c.l.b16 %v410
        %v699 = vunpack.c.l.b16 %v411
        %v700 = vunpack.c.l.b16 %v412
        %v701 = vunpack.c.l.b16 %v413
        %v702 = vunpack.c.l.b16 %v414
        %v703 = vunpack.c.l.b16 %v415
        %v704 = vunpack.c.l.b16 %v416
        %v705 = vunpack.c.l.b16 %v417
        %v706 = vunpack.c.l.b16 %v418
        %v707 = vunpack.c.l.b16 %v419
        %v708 = vunpack.c.l.b16 %v420
        %v709 = vunpack.c.l.b16 %v421
        %v710 = vunpack.c.l.b16 %v422
        %v711 = vunpack.c.l.b16 %v423
        %v712 = vunpack.c.l.b16 %v424
        %v713 = vunpack.c.l.b16 %v425
        %v714 = vunpack.c.l.b16 %v426
        %v715 = vunpack.c.l.b16 %v427
        %v716 = vunpack.c.l.b16 %v428
        %v717 = vunpack.c.l.b16 %v429
        %v718 = vunpack.c.l.b16 %v430
        %v719 = vunpack.c.l.b16 %v431
        %v720 = vunpack.c.l.b16 %v432
        %v721 = vunpack.c.l.b16 %v433
        %v722 = vunpack.c.l.b16 %v434
        %v723 = vunpack.c.l.b16 %v435
        %v724 = vunpack.c.l.b16 %v436
        %v725 = vunpack.c.l.b16 %v437
        %v726 = vunpack.c.l.b16 %v438
        %v727 = vunpack.c.l.b16 %v439
        %v728 = vunpack.c.l.b16 %v440
        %v729 = vunpack.c.l.b16 %v441
        %v730 = vunpack.c.l.b16 %v442
        %v731 = vunpack.c.l.b16 %v443
        %v732 = vpack.c.b16 %v669, %v668
        %v733 = vpack.c.b16 %v671, %v670
        %v734 = vpack.c.b16 %v673, %v672
        %v735 = vpack.c.b16 %v675, %v674
        %v736 = vpack.c.b16 %v677, %v676
        %v737 = vpack.c.b16 %v679, %v678
        %v738 = vpack.c.b16 %v681, %v680
        %v739 = vpack.c.b16 %v683, %v682
        %v740 = vpack.c.b16 %v685, %v684
        %v741 = vpack.c.b16 %v687, %v686
        %v742 = vpack.c.b16 %v689, %v688
        %v743 = vpack.c.b16 %v691, %v690
        %v744 = vpack.c.b16 %v693, %v692
        %v745 = vpack.c.b16 %v695, %v694
        %v746 = vpack.c.b16 %v697, %v696
        %v747 = vpack.c.b16 %v699, %v698
        %v748 = vpack.c.b16 %v701, %v700
        %v749 = vpack.c.b16 %v703, %v702
        %v750 = vpack.c.b16 %v705, %v704
        %v751 = vpack.c.b16 %v707, %v706
        %v752 = vpack.c.b16 %v709, %v708
        %v753 = vpack.c.b16 %v711, %v710
        %v754 = vpack.c.b16 %v713, %v712
        %v755 = vpack.c.b16 %v715, %v714
        %v756 = vpack.c.b16 %v717, %v716
        %v757 = vpack.c.b16 %v719, %v718
        %v758 = vpack.c.b16 %v721, %v720
        %v759 = vpack.c.b16 %v723, %v722
        %v760 = vpack.c.b16 %v725, %v724
        %v761 = vpack.c.b16 %v727, %v726
        %v762 = vpack.c.b16 %v729, %v728
        %v763 = vpack.c.b16 %v731, %v730
        %796 = vmatprep.subr.bf16.mxu0 0
        %797 = vmatpush1.bf16.msra.mxu0 %v732
        %798 = vmatprep.subr.bf16.mxu0 0
        %799 = vmatpush1.bf16.msra.mxu0 %v733
        %800 = vmatprep.subr.bf16.mxu0 0
        %801 = vmatpush1.bf16.msra.mxu0 %v734
        %802 = vmatprep.subr.bf16.mxu0 0
        %803 = vmatpush1.bf16.msra.mxu0 %v735
        %804 = vmatprep.subr.bf16.mxu0 0
        %805 = vmatpush1.bf16.msra.mxu0 %v736
        %806 = vmatprep.subr.bf16.mxu0 0
        %807 = vmatpush1.bf16.msra.mxu0 %v737
        %808 = vmatprep.subr.bf16.mxu0 0
        %809 = vmatpush1.bf16.msra.mxu0 %v738
        %810 = vmatprep.subr.bf16.mxu0 0
        %811 = vmatpush1.bf16.msra.mxu0 %v739
        %812 = vmatprep.subr.bf16.mxu0 0
        %813 = vmatpush1.bf16.msra.mxu0 %v740
        %814 = vmatprep.subr.bf16.mxu0 0
        %815 = vmatpush1.bf16.msra.mxu0 %v741
        %816 = vmatprep.subr.bf16.mxu0 0
        %817 = vmatpush1.bf16.msra.mxu0 %v742
        %818 = vmatprep.subr.bf16.mxu0 0
        %819 = vmatpush1.bf16.msra.mxu0 %v743
        %820 = vmatprep.subr.bf16.mxu0 0
        %821 = vmatpush1.bf16.msra.mxu0 %v744
        %822 = vmatprep.subr.bf16.mxu0 0
        %823 = vmatpush1.bf16.msra.mxu0 %v745
        %824 = vmatprep.subr.bf16.mxu0 0
        %825 = vmatpush1.bf16.msra.mxu0 %v746
        %826 = vmatprep.subr.bf16.mxu0 0
        %827 = vmatpush1.bf16.msra.mxu0 %v747
        %828 = vmatprep.mubr.bf16.mxu0 %v541
        %829 = vmatmul.mubr.bf16.gmra.mrb[0].mxu0 %v540
        %v830 = vpop.f32.mrb[0].mxu0
        %v831 = vadd.f32 0.0, %v830
        %v832 = vpop.f32.mrb[0].mxu0
        %v833 = vpop.f32.mrb[0].mxu0
        %v834 = vadd.f32 0.0, %v833
        %v835 = vpop.f32.mrb[0].mxu0
        %836 = vmatprep.mubr.bf16.mxu0 %v545
        %837 = vmatmul.mubr.bf16.gmra.mrb[0].mxu0 %v544
        %v838 = vpop.f32.mrb[0].mxu0
        %v839 = vadd.f32 0.0, %v838
        %v840 = vpop.f32.mrb[0].mxu0
        %v841 = vpop.f32.mrb[0].mxu0
        %v842 = vadd.f32 0.0, %v841
        %v843 = vpop.f32.mrb[0].mxu0
        %844 = vmatprep.mubr.bf16.mxu0 %v549
        %845 = vmatmul.mubr.bf16.gmra.mrb[0].mxu0 %v548
        %v846 = vpop.f32.mrb[0].mxu0
        %v847 = vadd.f32 0.0, %v846
        %v848 = vpop.f32.mrb[0].mxu0
        %v849 = vpop.f32.mrb[0].mxu0
        %v850 = vadd.f32 0.0, %v849
        %v851 = vpop.f32.mrb[0].mxu0
        %852 = vmatprep.mubr.bf16.mxu0 %v553
        %853 = vmatmul.mubr.bf16.gmra.mrb[0].mxu0 %v552
        %v854 = vpop.f32.mrb[0].mxu0
        %v855 = vadd.f32 0.0, %v854
        %v856 = vpop.f32.mrb[0].mxu0
        %v857 = vpop.f32.mrb[0].mxu0
        %v858 = vadd.f32 0.0, %v857
        %v859 = vpop.f32.mrb[0].mxu0
        %860 = vmatprep.mubr.bf16.mxu0 %v557
        %861 = vmatmul.mubr.bf16.gmra.mrb[0].mxu0 %v556
        %v862 = vpop.f32.mrb[0].mxu0
        %v863 = vadd.f32 0.0, %v862
        %v864 = vpop.f32.mrb[0].mxu0
        %v865 = vpop.f32.mrb[0].mxu0
        %v866 = vadd.f32 0.0, %v865
        %v867 = vpop.f32.mrb[0].mxu0
        %868 = vmatprep.mubr.bf16.mxu0 %v561
        %869 = vmatmul.mubr.bf16.gmra.mrb[0].mxu0 %v560
        %v870 = vpop.f32.mrb[0].mxu0
        %v871 = vadd.f32 0.0, %v870
        %v872 = vpop.f32.mrb[0].mxu0
        %v873 = vpop.f32.mrb[0].mxu0
        %v874 = vadd.f32 0.0, %v873
        %v875 = vpop.f32.mrb[0].mxu0
        %876 = vmatprep.mubr.bf16.mxu0 %v565
        %877 = vmatmul.mubr.bf16.gmra.mrb[0].mxu0 %v564
        %v878 = vpop.f32.mrb[0].mxu0
        %v879 = vadd.f32 0.0, %v878
        %v880 = vpop.f32.mrb[0].mxu0
        %v881 = vpop.f32.mrb[0].mxu0
        %v882 = vadd.f32 0.0, %v881
        %v883 = vpop.f32.mrb[0].mxu0
        %884 = vmatprep.mubr.bf16.mxu0 %v569
        %885 = vmatmul.mubr.bf16.gmra.mrb[0].mxu0 %v568
        %v886 = vpop.f32.mrb[0].mxu0
        %v887 = vadd.f32 0.0, %v886
        %v888 = vpop.f32.mrb[0].mxu0
        %v889 = vpop.f32.mrb[0].mxu0
        %v890 = vadd.f32 0.0, %v889
        %v891 = vpop.f32.mrb[0].mxu0
        %892 = vdwg.mxu0
        %893 = vmatprep.subr.bf16.mxu0 0
        %894 = vmatpush1.bf16.msra.mxu0 %v748
        %895 = vmatprep.subr.bf16.mxu0 0
        %896 = vmatpush1.bf16.msra.mxu0 %v749
        %897 = vmatprep.subr.bf16.mxu0 0
        %898 = vmatpush1.bf16.msra.mxu0 %v750
        %899 = vmatprep.subr.bf16.mxu0 0
        %900 = vmatpush1.bf16.msra.mxu0 %v751
        %901 = vmatprep.subr.bf16.mxu0 0
        %902 = vmatpush1.bf16.msra.mxu0 %v752
        %903 = vmatprep.subr.bf16.mxu0 0
        %904 = vmatpush1.bf16.msra.mxu0 %v753
        %905 = vmatprep.subr.bf16.mxu0 0
        %906 = vmatpush1.bf16.msra.mxu0 %v754
        %907 = vmatprep.subr.bf16.mxu0 0
        %908 = vmatpush1.bf16.msra.mxu0 %v755
        %909 = vmatprep.subr.bf16.mxu0 0
        %910 = vmatpush1.bf16.msra.mxu0 %v756
        %911 = vmatprep.subr.bf16.mxu0 0
        %912 = vmatpush1.bf16.msra.mxu0 %v757
        %913 = vmatprep.subr.bf16.mxu0 0
        %914 = vmatpush1.bf16.msra.mxu0 %v758
        %915 = vmatprep.subr.bf16.mxu0 0
        %916 = vmatpush1.bf16.msra.mxu0 %v759
        %917 = vmatprep.subr.bf16.mxu0 0
        %918 = vmatpush1.bf16.msra.mxu0 %v760
        %919 = vmatprep.subr.bf16.mxu0 0
        %920 = vmatpush1.bf16.msra.mxu0 %v761
        %921 = vmatprep.subr.bf16.mxu0 0
        %922 = vmatpush1.bf16.msra.mxu0 %v762
        %923 = vmatprep.subr.bf16.mxu0 0
        %924 = vmatpush1.bf16.msra.mxu0 %v763
        %925 = vmatprep.mubr.bf16.mxu0 %v543
        %926 = vmatmul.mubr.bf16.gmra.mrb[0].mxu0 %v542
        %v927 = vpop.f32.mrb[0].mxu0
        %v928 = vadd.f32 %v831, %v927
        %v929 = vpop.f32.mrb[0].mxu0
        %v930 = vpop.f32.mrb[0].mxu0
        %v931 = vadd.f32 %v834, %v930
        %v932 = vpop.f32.mrb[0].mxu0
        %933 = vmatprep.mubr.bf16.mxu0 %v547
        %934 = vmatmul.mubr.bf16.gmra.mrb[0].mxu0 %v546
        %v935 = vpop.f32.mrb[0].mxu0
        %v936 = vadd.f32 %v839, %v935
        %v937 = vpop.f32.mrb[0].mxu0
        %v938 = vpop.f32.mrb[0].mxu0
        %v939 = vadd.f32 %v842, %v938
        %v940 = vpop.f32.mrb[0].mxu0
        %941 = vmatprep.mubr.bf16.mxu0 %v551
        %942 = vmatmul.mubr.bf16.gmra.mrb[0].mxu0 %v550
        %v943 = vpop.f32.mrb[0].mxu0
        %v944 = vadd.f32 %v847, %v943
        %v945 = vpop.f32.mrb[0].mxu0
        %v946 = vpop.f32.mrb[0].mxu0
        %v947 = vadd.f32 %v850, %v946
        %v948 = vpop.f32.mrb[0].mxu0
        %949 = vmatprep.mubr.bf16.mxu0 %v555
        %950 = vmatmul.mubr.bf16.gmra.mrb[0].mxu0 %v554
        %v951 = vpop.f32.mrb[0].mxu0
        %v952 = vadd.f32 %v855, %v951
        %v953 = vpop.f32.mrb[0].mxu0
        %v954 = vpop.f32.mrb[0].mxu0
        %v955 = vadd.f32 %v858, %v954
        %v956 = vpop.f32.mrb[0].mxu0
        %957 = vmatprep.mubr.bf16.mxu0 %v559
        %958 = vmatmul.mubr.bf16.gmra.mrb[0].mxu0 %v558
        %v959 = vpop.f32.mrb[0].mxu0
        %v960 = vadd.f32 %v863, %v959
        %v961 = vpop.f32.mrb[0].mxu0
        %v962 = vpop.f32.mrb[0].mxu0
        %v963 = vadd.f32 %v866, %v962
        %v964 = vpop.f32.mrb[0].mxu0
        %965 = vmatprep.mubr.bf16.mxu0 %v563
        %966 = vmatmul.mubr.bf16.gmra.mrb[0].mxu0 %v562
        %v967 = vpop.f32.mrb[0].mxu0
        %v968 = vadd.f32 %v871, %v967
        %v969 = vpop.f32.mrb[0].mxu0
        %v970 = vpop.f32.mrb[0].mxu0
        %v971 = vadd.f32 %v874, %v970
        %v972 = vpop.f32.mrb[0].mxu0
        %973 = vmatprep.mubr.bf16.mxu0 %v567
        %974 = vmatmul.mubr.bf16.gmra.mrb[0].mxu0 %v566
        %v975 = vpop.f32.mrb[0].mxu0
        %v976 = vadd.f32 %v879, %v975
        %v977 = vpop.f32.mrb[0].mxu0
        %v978 = vpop.f32.mrb[0].mxu0
        %v979 = vadd.f32 %v882, %v978
        %v980 = vpop.f32.mrb[0].mxu0
        %981 = vmatprep.mubr.bf16.mxu0 %v571
        %982 = vmatmul.mubr.bf16.gmra.mrb[0].mxu0 %v570
        %v983 = vpop.f32.mrb[0].mxu0
        %v984 = vadd.f32 %v887, %v983
        %v985 = vpop.f32.mrb[0].mxu0
        %v986 = vpop.f32.mrb[0].mxu0
        %v987 = vadd.f32 %v890, %v986
        %v988 = vpop.f32.mrb[0].mxu0
        %989 = vdwg.mxu0
        %v990 = vadd.f32 %v332, %v928
        %v991 = vadd.f32 %v333, %v931
        %v992 = vadd.f32 %v334, %v936
        %v993 = vadd.f32 %v335, %v939
        %v994 = vadd.f32 %v336, %v944
        %v995 = vadd.f32 %v337, %v947
        %v996 = vadd.f32 %v338, %v952
        %v997 = vadd.f32 %v339, %v955
        %v998 = vadd.f32 %v340, %v960
        %v999 = vadd.f32 %v341, %v963
        %v1000 = vadd.f32 %v342, %v968
        %v1001 = vadd.f32 %v343, %v971
        %v1002 = vadd.f32 %v344, %v976
        %v1003 = vadd.f32 %v345, %v979
        %v1004 = vadd.f32 %v346, %v984
        %v1005 = vadd.f32 %v347, %v987
        %1006 = vst [vmem:[#allocation2] sm:$0xff] %v990
        %1007 = vst [vmem:[#allocation2 + $0x8] sm:$0xff] %v991
        %1008 = vst [vmem:[#allocation2 + $0x10] sm:$0xff] %v992
        %1009 = vst [vmem:[#allocation2 + $0x18] sm:$0xff] %v993
        %1010 = vst [vmem:[#allocation2 + $0x20] sm:$0xff] %v994
        %1011 = vst [vmem:[#allocation2 + $0x28] sm:$0xff] %v995
        %1012 = vst [vmem:[#allocation2 + $0x30] sm:$0xff] %v996
        %1013 = vst [vmem:[#allocation2 + $0x38] sm:$0xff] %v997
        %1014 = vst [vmem:[#allocation2 + $0x40] sm:$0xff] %v998
        %1015 = vst [vmem:[#allocation2 + $0x48] sm:$0xff] %v999
        %1016 = vst [vmem:[#allocation2 + $0x50] sm:$0xff] %v1000
        %1017 = vst [vmem:[#allocation2 + $0x58] sm:$0xff] %v1001
        %1018 = vst [vmem:[#allocation2 + $0x60] sm:$0xff] %v1002
        %1019 = vst [vmem:[#allocation2 + $0x68] sm:$0xff] %v1003
        %1020 = vst [vmem:[#allocation2 + $0x70] sm:$0xff] %v1004
        %1021 = vst [vmem:[#allocation2 + $0x78] sm:$0xff] %v1005
        %p1022 = scmp.eq.s32.totalorder %s28, 1
        // Predicated region
        $region57: #{tpu_custom_call.1} parent=39 // pred_check
          %p1023 = pneg %p1022
        $region58: #{tpu_custom_call.1} parent=39 // pred_check_branch
          %1025 = sbr.rel (%p1023) target = $region60
        $region59: #{tpu_custom_call.1} parent=39 // pred_region
          %v1026 = vld [vmem:[#allocation2] sm:$0xff]
          %v1027 = vld [vmem:[#allocation2 + $0x8] sm:$0xff]
          %v1028 = vld [vmem:[#allocation2 + $0x10] sm:$0xff]
          %v1029 = vld [vmem:[#allocation2 + $0x18] sm:$0xff]
          %v1030 = vld [vmem:[#allocation2 + $0x20] sm:$0xff]
          %v1031 = vld [vmem:[#allocation2 + $0x28] sm:$0xff]
          %v1032 = vld [vmem:[#allocation2 + $0x30] sm:$0xff]
          %v1033 = vld [vmem:[#allocation2 + $0x38] sm:$0xff]
          %v1034 = vld [vmem:[#allocation2 + $0x40] sm:$0xff]
          %v1035 = vld [vmem:[#allocation2 + $0x48] sm:$0xff]
          %v1036 = vld [vmem:[#allocation2 + $0x50] sm:$0xff]
          %v1037 = vld [vmem:[#allocation2 + $0x58] sm:$0xff]
          %v1038 = vld [vmem:[#allocation2 + $0x60] sm:$0xff]
          %v1039 = vld [vmem:[#allocation2 + $0x68] sm:$0xff]
          %v1040 = vld [vmem:[#allocation2 + $0x70] sm:$0xff]
          %v1041 = vld [vmem:[#allocation2 + $0x78] sm:$0xff]
          %v1042 = vld [vmem:[%s2] sm:$0x1]
          %v1044 = vlaneseq
          %v1045 = vshrl.u32 %v1044, 7
          %v1046 = vsub.s32 0, %v1045
          %v1047 = vrot.slane %v1042, %v1046
          %v1049 = vadd.f32 %v1026, %v1047
          %v1050 = vadd.f32 %v1027, %v1047
          %v1051 = vadd.f32 %v1028, %v1047
          %v1052 = vadd.f32 %v1029, %v1047
          %v1053 = vadd.f32 %v1030, %v1047
          %v1054 = vadd.f32 %v1031, %v1047
          %v1055 = vadd.f32 %v1032, %v1047
          %v1056 = vadd.f32 %v1033, %v1047
          %v1057 = vadd.f32 %v1034, %v1047
          %v1058 = vadd.f32 %v1035, %v1047
          %v1059 = vadd.f32 %v1036, %v1047
          %v1060 = vadd.f32 %v1037, %v1047
          %v1061 = vadd.f32 %v1038, %v1047
          %v1062 = vadd.f32 %v1039, %v1047
          %v1063 = vadd.f32 %v1040, %v1047
          %v1064 = vadd.f32 %v1041, %v1047
          %v1065 = vmax.f32 %v1049, 0.0
          %v1066 = vmax.f32 %v1050, 0.0
          %v1067 = vmax.f32 %v1051, 0.0
          %v1068 = vmax.f32 %v1052, 0.0
          %v1069 = vmax.f32 %v1053, 0.0
          %v1070 = vmax.f32 %v1054, 0.0
          %v1071 = vmax.f32 %v1055, 0.0
          %v1072 = vmax.f32 %v1056, 0.0
          %v1073 = vmax.f32 %v1057, 0.0
          %v1074 = vmax.f32 %v1058, 0.0
          %v1075 = vmax.f32 %v1059, 0.0
          %v1076 = vmax.f32 %v1060, 0.0
          %v1077 = vmax.f32 %v1061, 0.0
          %v1078 = vmax.f32 %v1062, 0.0
          %v1079 = vmax.f32 %v1063, 0.0
          %v1080 = vmax.f32 %v1064, 0.0
          %v1081 = vpack.c.bf16 %v1066, %v1065
          %v1082 = vpack.c.bf16 %v1068, %v1067
          %v1083 = vpack.c.bf16 %v1070, %v1069
          %v1084 = vpack.c.bf16 %v1072, %v1071
          %v1085 = vpack.c.bf16 %v1074, %v1073
          %v1086 = vpack.c.bf16 %v1076, %v1075
          %v1087 = vpack.c.bf16 %v1078, %v1077
          %v1088 = vpack.c.bf16 %v1080, %v1079
          %v1089 = vld [vmem:[#allocation8] sm:$0xff]
          %v1090 = vld [vmem:[#allocation8 + $0x8] sm:$0xff]
          %v1091 = vld [vmem:[#allocation8 + $0x10] sm:$0xff]
          %v1092 = vld [vmem:[#allocation8 + $0x18] sm:$0xff]
          %v1093 = vld [vmem:[#allocation8 + $0x20] sm:$0xff]
          %v1094 = vld [vmem:[#allocation8 + $0x28] sm:$0xff]
          %v1095 = vld [vmem:[#allocation8 + $0x30] sm:$0xff]
          %v1096 = vld [vmem:[#allocation8 + $0x38] sm:$0xff]
          %v1097 = vld [vmem:[#allocation8 + $0x40] sm:$0xff]
          %v1098 = vld [vmem:[#allocation8 + $0x48] sm:$0xff]
          %v1099 = vld [vmem:[#allocation8 + $0x50] sm:$0xff]
          %v1100 = vld [vmem:[#allocation8 + $0x58] sm:$0xff]
          %v1101 = vld [vmem:[#allocation8 + $0x60] sm:$0xff]
          %v1102 = vld [vmem:[#allocation8 + $0x68] sm:$0xff]
          %v1103 = vld [vmem:[#allocation8 + $0x70] sm:$0xff]
          %v1104 = vld [vmem:[#allocation8 + $0x78] sm:$0xff]
          %v1105 = vld [vmem:[#allocation8 + $0x80] sm:$0xff]
          %v1106 = vld [vmem:[#allocation8 + $0x88] sm:$0xff]
          %v1107 = vld [vmem:[#allocation8 + $0x90] sm:$0xff]
          %v1108 = vld [vmem:[#allocation8 + $0x98] sm:$0xff]
          %v1109 = vld [vmem:[#allocation8 + $0xa0] sm:$0xff]
          %v1110 = vld [vmem:[#allocation8 + $0xa8] sm:$0xff]
          %v1111 = vld [vmem:[#allocation8 + $0xb0] sm:$0xff]
          %v1112 = vld [vmem:[#allocation8 + $0xb8] sm:$0xff]
          %v1113 = vld [vmem:[#allocation8 + $0xc0] sm:$0xff]
          %v1114 = vld [vmem:[#allocation8 + $0xc8] sm:$0xff]
          %v1115 = vld [vmem:[#allocation8 + $0xd0] sm:$0xff]
          %v1116 = vld [vmem:[#allocation8 + $0xd8] sm:$0xff]
          %v1117 = vld [vmem:[#allocation8 + $0xe0] sm:$0xff]
          %v1118 = vld [vmem:[#allocation8 + $0xe8] sm:$0xff]
          %v1119 = vld [vmem:[#allocation8 + $0xf0] sm:$0xff]
          %v1120 = vld [vmem:[#allocation8 + $0xf8] sm:$0xff]
          %v1121 = vld [vmem:[#allocation8 + $0x100] sm:$0xff]
          %v1122 = vld [vmem:[#allocation8 + $0x108] sm:$0xff]
          %v1123 = vld [vmem:[#allocation8 + $0x110] sm:$0xff]
          %v1124 = vld [vmem:[#allocation8 + $0x118] sm:$0xff]
          %v1125 = vld [vmem:[#allocation8 + $0x120] sm:$0xff]
          %v1126 = vld [vmem:[#allocation8 + $0x128] sm:$0xff]
          %v1127 = vld [vmem:[#allocation8 + $0x130] sm:$0xff]
          %v1128 = vld [vmem:[#allocation8 + $0x138] sm:$0xff]
          %v1129 = vld [vmem:[#allocation8 + $0x140] sm:$0xff]
          %v1130 = vld [vmem:[#allocation8 + $0x148] sm:$0xff]
          %v1131 = vld [vmem:[#allocation8 + $0x150] sm:$0xff]
          %v1132 = vld [vmem:[#allocation8 + $0x158] sm:$0xff]
          %v1133 = vld [vmem:[#allocation8 + $0x160] sm:$0xff]
          %v1134 = vld [vmem:[#allocation8 + $0x168] sm:$0xff]
          %v1135 = vld [vmem:[#allocation8 + $0x170] sm:$0xff]
          %v1136 = vld [vmem:[#allocation8 + $0x178] sm:$0xff]
          %v1137 = vld [vmem:[#allocation8 + $0x180] sm:$0xff]
          %v1138 = vld [vmem:[#allocation8 + $0x188] sm:$0xff]
          %v1139 = vld [vmem:[#allocation8 + $0x190] sm:$0xff]
          %v1140 = vld [vmem:[#allocation8 + $0x198] sm:$0xff]
          %v1141 = vld [vmem:[#allocation8 + $0x1a0] sm:$0xff]
          %v1142 = vld [vmem:[#allocation8 + $0x1a8] sm:$0xff]
          %v1143 = vld [vmem:[#allocation8 + $0x1b0] sm:$0xff]
          %v1144 = vld [vmem:[#allocation8 + $0x1b8] sm:$0xff]
          %v1145 = vld [vmem:[#allocation8 + $0x1c0] sm:$0xff]
          %v1146 = vld [vmem:[#allocation8 + $0x1c8] sm:$0xff]
          %v1147 = vld [vmem:[#allocation8 + $0x1d0] sm:$0xff]
          %v1148 = vld [vmem:[#allocation8 + $0x1d8] sm:$0xff]
          %v1149 = vld [vmem:[#allocation8 + $0x1e0] sm:$0xff]
          %v1150 = vld [vmem:[#allocation8 + $0x1e8] sm:$0xff]
          %v1151 = vld [vmem:[#allocation8 + $0x1f0] sm:$0xff]
          %v1152 = vld [vmem:[#allocation8 + $0x1f8] sm:$0xff]
          %v1153 = vld [vmem:[%s4] sm:$0xff]
          %v1155 = vlaneseq
          %v1156 = vshrl.u32 %v1155, 7
          %v1157 = vsub.s32 0, %v1156
          %v1158 = vrot.slane %v1153, %v1157
          %v1159 = vlaneseq
          %v1160 = vshrl.u32 %v1159, 7
          %v1161 = vsub.s32 1, %v1160
          %v1162 = vrot.slane %v1153, %v1161
          %v1163 = vlaneseq
          %v1164 = vshrl.u32 %v1163, 7
          %v1165 = vsub.s32 2, %v1164
          %v1166 = vrot.slane %v1153, %v1165
          %v1167 = vlaneseq
          %v1168 = vshrl.u32 %v1167, 7
          %v1169 = vsub.s32 3, %v1168
          %v1170 = vrot.slane %v1153, %v1169
          %v1171 = vlaneseq
          %v1172 = vshrl.u32 %v1171, 7
          %v1173 = vsub.s32 4, %v1172
          %v1174 = vrot.slane %v1153, %v1173
          %v1175 = vlaneseq
          %v1176 = vshrl.u32 %v1175, 7
          %v1177 = vsub.s32 5, %v1176
          %v1178 = vrot.slane %v1153, %v1177
          %v1179 = vlaneseq
          %v1180 = vshrl.u32 %v1179, 7
          %v1181 = vsub.s32 6, %v1180
          %v1182 = vrot.slane %v1153, %v1181
          %v1183 = vlaneseq
          %v1184 = vshrl.u32 %v1183, 7
          %v1185 = vsub.s32 7, %v1184
          %v1186 = vrot.slane %v1153, %v1185
          %v1259 = vunpack.c.l.b16 %v1089
          %v1260 = vunpack.c.h.b16 %v1089
          %v1261 = vunpack.c.l.b16 %v1090
          %v1262 = vunpack.c.h.b16 %v1090
          %v1263 = vunpack.c.l.b16 %v1091
          %v1264 = vunpack.c.h.b16 %v1091
          %v1265 = vunpack.c.l.b16 %v1092
          %v1266 = vunpack.c.h.b16 %v1092
          %v1267 = vunpack.c.l.b16 %v1093
          %v1268 = vunpack.c.h.b16 %v1093
          %v1269 = vunpack.c.l.b16 %v1094
          %v1270 = vunpack.c.h.b16 %v1094
          %v1271 = vunpack.c.l.b16 %v1095
          %v1272 = vunpack.c.h.b16 %v1095
          %v1273 = vunpack.c.l.b16 %v1096
          %v1274 = vunpack.c.h.b16 %v1096
          %v1275 = vunpack.c.l.b16 %v1097
          %v1276 = vunpack.c.h.b16 %v1097
          %v1277 = vunpack.c.l.b16 %v1098
          %v1278 = vunpack.c.h.b16 %v1098
          %v1279 = vunpack.c.l.b16 %v1099
          %v1280 = vunpack.c.h.b16 %v1099
          %v1281 = vunpack.c.l.b16 %v1100
          %v1282 = vunpack.c.h.b16 %v1100
          %v1283 = vunpack.c.l.b16 %v1101
          %v1284 = vunpack.c.h.b16 %v1101
          %v1285 = vunpack.c.l.b16 %v1102
          %v1286 = vunpack.c.h.b16 %v1102
          %v1287 = vunpack.c.l.b16 %v1103
          %v1288 = vunpack.c.h.b16 %v1103
          %v1289 = vunpack.c.l.b16 %v1104
          %v1290 = vunpack.c.h.b16 %v1104
          %v1291 = vunpack.c.l.b16 %v1105
          %v1292 = vunpack.c.h.b16 %v1105
          %v1293 = vunpack.c.l.b16 %v1106
          %v1294 = vunpack.c.h.b16 %v1106
          %v1295 = vunpack.c.l.b16 %v1107
          %v1296 = vunpack.c.h.b16 %v1107
          %v1297 = vunpack.c.l.b16 %v1108
          %v1298 = vunpack.c.h.b16 %v1108
          %v1299 = vunpack.c.l.b16 %v1109
          %v1300 = vunpack.c.h.b16 %v1109
          %v1301 = vunpack.c.l.b16 %v1110
          %v1302 = vunpack.c.h.b16 %v1110
          %v1303 = vunpack.c.l.b16 %v1111
          %v1304 = vunpack.c.h.b16 %v1111
          %v1305 = vunpack.c.l.b16 %v1112
          %v1306 = vunpack.c.h.b16 %v1112
          %v1307 = vunpack.c.l.b16 %v1113
          %v1308 = vunpack.c.h.b16 %v1113
          %v1309 = vunpack.c.l.b16 %v1114
          %v1310 = vunpack.c.h.b16 %v1114
          %v1311 = vunpack.c.l.b16 %v1115
          %v1312 = vunpack.c.h.b16 %v1115
          %v1313 = vunpack.c.l.b16 %v1116
          %v1314 = vunpack.c.h.b16 %v1116
          %v1315 = vunpack.c.l.b16 %v1117
          %v1316 = vunpack.c.h.b16 %v1117
          %v1317 = vunpack.c.l.b16 %v1118
          %v1318 = vunpack.c.h.b16 %v1118
          %v1319 = vunpack.c.l.b16 %v1119
          %v1320 = vunpack.c.h.b16 %v1119
          %v1321 = vunpack.c.l.b16 %v1120
          %v1322 = vunpack.c.h.b16 %v1120
          %v1323 = vunpack.c.l.b16 %v1121
          %v1324 = vunpack.c.h.b16 %v1121
          %v1325 = vunpack.c.l.b16 %v1122
          %v1326 = vunpack.c.h.b16 %v1122
          %v1327 = vunpack.c.l.b16 %v1123
          %v1328 = vunpack.c.h.b16 %v1123
          %v1329 = vunpack.c.l.b16 %v1124
          %v1330 = vunpack.c.h.b16 %v1124
          %v1331 = vunpack.c.l.b16 %v1125
          %v1332 = vunpack.c.h.b16 %v1125
          %v1333 = vunpack.c.l.b16 %v1126
          %v1334 = vunpack.c.h.b16 %v1126
          %v1335 = vunpack.c.l.b16 %v1127
          %v1336 = vunpack.c.h.b16 %v1127
          %v1337 = vunpack.c.l.b16 %v1128
          %v1338 = vunpack.c.h.b16 %v1128
          %v1339 = vunpack.c.l.b16 %v1129
          %v1340 = vunpack.c.h.b16 %v1129
          %v1341 = vunpack.c.l.b16 %v1130
          %v1342 = vunpack.c.h.b16 %v1130
          %v1343 = vunpack.c.l.b16 %v1131
          %v1344 = vunpack.c.h.b16 %v1131
          %v1345 = vunpack.c.l.b16 %v1132
          %v1346 = vunpack.c.h.b16 %v1132
          %v1347 = vunpack.c.l.b16 %v1133
          %v1348 = vunpack.c.h.b16 %v1133
          %v1349 = vunpack.c.l.b16 %v1134
          %v1350 = vunpack.c.h.b16 %v1134
          %v1351 = vunpack.c.l.b16 %v1135
          %v1352 = vunpack.c.h.b16 %v1135
          %v1353 = vunpack.c.l.b16 %v1136
          %v1354 = vunpack.c.h.b16 %v1136
          %v1355 = vunpack.c.l.b16 %v1137
          %v1356 = vunpack.c.h.b16 %v1137
          %v1357 = vunpack.c.l.b16 %v1138
          %v1358 = vunpack.c.h.b16 %v1138
          %v1359 = vunpack.c.l.b16 %v1139
          %v1360 = vunpack.c.h.b16 %v1139
          %v1361 = vunpack.c.l.b16 %v1140
          %v1362 = vunpack.c.h.b16 %v1140
          %v1363 = vunpack.c.l.b16 %v1141
          %v1364 = vunpack.c.h.b16 %v1141
          %v1365 = vunpack.c.l.b16 %v1142
          %v1366 = vunpack.c.h.b16 %v1142
          %v1367 = vunpack.c.l.b16 %v1143
          %v1368 = vunpack.c.h.b16 %v1143
          %v1369 = vunpack.c.l.b16 %v1144
          %v1370 = vunpack.c.h.b16 %v1144
          %v1371 = vunpack.c.l.b16 %v1145
          %v1372 = vunpack.c.h.b16 %v1145
          %v1373 = vunpack.c.l.b16 %v1146
          %v1374 = vunpack.c.h.b16 %v1146
          %v1375 = vunpack.c.l.b16 %v1147
          %v1376 = vunpack.c.h.b16 %v1147
          %v1377 = vunpack.c.l.b16 %v1148
          %v1378 = vunpack.c.h.b16 %v1148
          %v1379 = vunpack.c.l.b16 %v1149
          %v1380 = vunpack.c.h.b16 %v1149
          %v1381 = vunpack.c.l.b16 %v1150
          %v1382 = vunpack.c.h.b16 %v1150
          %v1383 = vunpack.c.l.b16 %v1151
          %v1384 = vunpack.c.h.b16 %v1151
          %v1385 = vunpack.c.l.b16 %v1152
          %v1386 = vunpack.c.h.b16 %v1152
          %v1387 = vpack.c.b16 %v1267, %v1259
          %v1388 = vpack.c.b16 %v1268, %v1260
          %v1389 = vpack.c.b16 %v1269, %v1261
          %v1390 = vpack.c.b16 %v1270, %v1262
          %v1391 = vpack.c.b16 %v1271, %v1263
          %v1392 = vpack.c.b16 %v1272, %v1264
          %v1393 = vpack.c.b16 %v1273, %v1265
          %v1394 = vpack.c.b16 %v1274, %v1266
          %v1395 = vpack.c.b16 %v1283, %v1275
          %v1396 = vpack.c.b16 %v1284, %v1276
          %v1397 = vpack.c.b16 %v1285, %v1277
          %v1398 = vpack.c.b16 %v1286, %v1278
          %v1399 = vpack.c.b16 %v1287, %v1279
          %v1400 = vpack.c.b16 %v1288, %v1280
          %v1401 = vpack.c.b16 %v1289, %v1281
          %v1402 = vpack.c.b16 %v1290, %v1282
          %v1403 = vpack.c.b16 %v1299, %v1291
          %v1404 = vpack.c.b16 %v1300, %v1292
          %v1405 = vpack.c.b16 %v1301, %v1293
          %v1406 = vpack.c.b16 %v1302, %v1294
          %v1407 = vpack.c.b16 %v1303, %v1295
          %v1408 = vpack.c.b16 %v1304, %v1296
          %v1409 = vpack.c.b16 %v1305, %v1297
          %v1410 = vpack.c.b16 %v1306, %v1298
          %v1411 = vpack.c.b16 %v1315, %v1307
          %v1412 = vpack.c.b16 %v1316, %v1308
          %v1413 = vpack.c.b16 %v1317, %v1309
          %v1414 = vpack.c.b16 %v1318, %v1310
          %v1415 = vpack.c.b16 %v1319, %v1311
          %v1416 = vpack.c.b16 %v1320, %v1312
          %v1417 = vpack.c.b16 %v1321, %v1313
          %v1418 = vpack.c.b16 %v1322, %v1314
          %v1419 = vpack.c.b16 %v1331, %v1323
          %v1420 = vpack.c.b16 %v1332, %v1324
          %v1421 = vpack.c.b16 %v1333, %v1325
          %v1422 = vpack.c.b16 %v1334, %v1326
          %v1423 = vpack.c.b16 %v1335, %v1327
          %v1424 = vpack.c.b16 %v1336, %v1328
          %v1425 = vpack.c.b16 %v1337, %v1329
          %v1426 = vpack.c.b16 %v1338, %v1330
          %v1427 = vpack.c.b16 %v1347, %v1339
          %v1428 = vpack.c.b16 %v1348, %v1340
          %v1429 = vpack.c.b16 %v1349, %v1341
          %v1430 = vpack.c.b16 %v1350, %v1342
          %v1431 = vpack.c.b16 %v1351, %v1343
          %v1432 = vpack.c.b16 %v1352, %v1344
          %v1433 = vpack.c.b16 %v1353, %v1345
          %v1434 = vpack.c.b16 %v1354, %v1346
          %v1435 = vpack.c.b16 %v1363, %v1355
          %v1436 = vpack.c.b16 %v1364, %v1356
          %v1437 = vpack.c.b16 %v1365, %v1357
          %v1438 = vpack.c.b16 %v1366, %v1358
          %v1439 = vpack.c.b16 %v1367, %v1359
          %v1440 = vpack.c.b16 %v1368, %v1360
          %v1441 = vpack.c.b16 %v1369, %v1361
          %v1442 = vpack.c.b16 %v1370, %v1362
          %v1443 = vpack.c.b16 %v1379, %v1371
          %v1444 = vpack.c.b16 %v1380, %v1372
          %v1445 = vpack.c.b16 %v1381, %v1373
          %v1446 = vpack.c.b16 %v1382, %v1374
          %v1447 = vpack.c.b16 %v1383, %v1375
          %v1448 = vpack.c.b16 %v1384, %v1376
          %v1449 = vpack.c.b16 %v1385, %v1377
          %v1450 = vpack.c.b16 %v1386, %v1378
          %1515 = vmatprep.subr.bf16.mxu0 %v1388
          %1516 = vmatpush1.bf16.msra.mxu0 %v1387
          %1517 = vmatprep.subr.bf16.mxu0 %v1396
          %1518 = vmatpush1.bf16.msra.mxu0 %v1395
          %1519 = vmatprep.subr.bf16.mxu0 %v1404
          %1520 = vmatpush1.bf16.msra.mxu0 %v1403
          %1521 = vmatprep.subr.bf16.mxu0 %v1412
          %1522 = vmatpush1.bf16.msra.mxu0 %v1411
          %1523 = vmatprep.subr.bf16.mxu0 %v1420
          %1524 = vmatpush1.bf16.msra.mxu0 %v1419
          %1525 = vmatprep.subr.bf16.mxu0 %v1428
          %1526 = vmatpush1.bf16.msra.mxu0 %v1427
          %1527 = vmatprep.subr.bf16.mxu0 %v1436
          %1528 = vmatpush1.bf16.msra.mxu0 %v1435
          %1529 = vmatprep.subr.bf16.mxu0 %v1444
          %1530 = vmatpush1.bf16.msra.mxu0 %v1443
          %1531 = vmatprep.subr.bf16.mxu0 0
          %1532 = vmatpush1.bf16.msra.mxu0 0
          %1533 = vmatprep.subr.bf16.mxu0 0
          %1534 = vmatpush1.bf16.msra.mxu0 0
          %1535 = vmatprep.subr.bf16.mxu0 0
          %1536 = vmatpush1.bf16.msra.mxu0 0
          %1537 = vmatprep.subr.bf16.mxu0 0
          %1538 = vmatpush1.bf16.msra.mxu0 0
          %1539 = vmatprep.subr.bf16.mxu0 0
          %1540 = vmatpush1.bf16.msra.mxu0 0
          %1541 = vmatprep.subr.bf16.mxu0 0
          %1542 = vmatpush1.bf16.msra.mxu0 0
          %1543 = vmatprep.subr.bf16.mxu0 0
          %1544 = vmatpush1.bf16.msra.mxu0 0
          %1545 = vmatprep.subr.bf16.mxu0 0
          %1546 = vmatpush1.bf16.msra.mxu0 0
          %1547 = vmatprep.mubr.bf16.mxu0 0
          %1548 = vmatmul.mubr.bf16.gmra.mrb[0].mxu0 %v1081
          %v1549 = vpop.f32.mrb[0].mxu0
          %v1550 = vadd.f32 %v1158, %v1549
          %v1551 = vpop.f32.mrb[0].mxu0
          %v1552 = vadd.f32 %v1162, %v1551
          %v1553 = vpop.f32.mrb[0].mxu0
          %v1554 = vadd.f32 %v1158, %v1553
          %v1555 = vpop.f32.mrb[0].mxu0
          %v1556 = vadd.f32 %v1162, %v1555
          %1557 = vmatprep.mubr.bf16.mxu0 0
          %1558 = vmatmul.mubr.bf16.gmra.mrb[0].mxu0 %v1082
          %v1559 = vpop.f32.mrb[0].mxu0
          %v1560 = vadd.f32 %v1158, %v1559
          %v1561 = vpop.f32.mrb[0].mxu0
          %v1562 = vadd.f32 %v1162, %v1561
          %v1563 = vpop.f32.mrb[0].mxu0
          %v1564 = vadd.f32 %v1158, %v1563
          %v1565 = vpop.f32.mrb[0].mxu0
          %v1566 = vadd.f32 %v1162, %v1565
          %1567 = vmatprep.mubr.bf16.mxu0 0
          %1568 = vmatmul.mubr.bf16.gmra.mrb[0].mxu0 %v1083
          %v1569 = vpop.f32.mrb[0].mxu0
          %v1570 = vadd.f32 %v1158, %v1569
          %v1571 = vpop.f32.mrb[0].mxu0
          %v1572 = vadd.f32 %v1162, %v1571
          %v1573 = vpop.f32.mrb[0].mxu0
          %v1574 = vadd.f32 %v1158, %v1573
          %v1575 = vpop.f32.mrb[0].mxu0
          %v1576 = vadd.f32 %v1162, %v1575
          %1577 = vmatprep.mubr.bf16.mxu0 0
          %1578 = vmatmul.mubr.bf16.gmra.mrb[0].mxu0 %v1084
          %v1579 = vpop.f32.mrb[0].mxu0
          %v1580 = vadd.f32 %v1158, %v1579
          %v1581 = vpop.f32.mrb[0].mxu0
          %v1582 = vadd.f32 %v1162, %v1581
          %v1583 = vpop.f32.mrb[0].mxu0
          %v1584 = vadd.f32 %v1158, %v1583
          %v1585 = vpop.f32.mrb[0].mxu0
          %v1586 = vadd.f32 %v1162, %v1585
          %1587 = vmatprep.mubr.bf16.mxu0 0
          %1588 = vmatmul.mubr.bf16.gmra.mrb[0].mxu0 %v1085
          %v1589 = vpop.f32.mrb[0].mxu0
          %v1590 = vadd.f32 %v1158, %v1589
          %v1591 = vpop.f32.mrb[0].mxu0
          %v1592 = vadd.f32 %v1162, %v1591
          %v1593 = vpop.f32.mrb[0].mxu0
          %v1594 = vadd.f32 %v1158, %v1593
          %v1595 = vpop.f32.mrb[0].mxu0
          %v1596 = vadd.f32 %v1162, %v1595
          %1597 = vmatprep.mubr.bf16.mxu0 0
          %1598 = vmatmul.mubr.bf16.gmra.mrb[0].mxu0 %v1086
          %v1599 = vpop.f32.mrb[0].mxu0
          %v1600 = vadd.f32 %v1158, %v1599
          %v1601 = vpop.f32.mrb[0].mxu0
          %v1602 = vadd.f32 %v1162, %v1601
          %v1603 = vpop.f32.mrb[0].mxu0
          %v1604 = vadd.f32 %v1158, %v1603
          %v1605 = vpop.f32.mrb[0].mxu0
          %v1606 = vadd.f32 %v1162, %v1605
          %1607 = vmatprep.mubr.bf16.mxu0 0
          %1608 = vmatmul.mubr.bf16.gmra.mrb[0].mxu0 %v1087
          %v1609 = vpop.f32.mrb[0].mxu0
          %v1610 = vadd.f32 %v1158, %v1609
          %v1611 = vpop.f32.mrb[0].mxu0
          %v1612 = vadd.f32 %v1162, %v1611
          %v1613 = vpop.f32.mrb[0].mxu0
          %v1614 = vadd.f32 %v1158, %v1613
          %v1615 = vpop.f32.mrb[0].mxu0
          %v1616 = vadd.f32 %v1162, %v1615
          %1617 = vmatprep.mubr.bf16.mxu0 0
          %1618 = vmatmul.mubr.bf16.gmra.mrb[0].mxu0 %v1088
          %v1619 = vpop.f32.mrb[0].mxu0
          %v1620 = vadd.f32 %v1158, %v1619
          %v1621 = vpop.f32.mrb[0].mxu0
          %v1622 = vadd.f32 %v1162, %v1621
          %v1623 = vpop.f32.mrb[0].mxu0
          %v1624 = vadd.f32 %v1158, %v1623
          %v1625 = vpop.f32.mrb[0].mxu0
          %v1626 = vadd.f32 %v1162, %v1625
          %1627 = vdwg.mxu0
          %1628 = vmatprep.subr.bf16.mxu0 %v1390
          %1629 = vmatpush1.bf16.msra.mxu0 %v1389
          %1630 = vmatprep.subr.bf16.mxu0 %v1398
          %1631 = vmatpush1.bf16.msra.mxu0 %v1397
          %1632 = vmatprep.subr.bf16.mxu0 %v1406
          %1633 = vmatpush1.bf16.msra.mxu0 %v1405
          %1634 = vmatprep.subr.bf16.mxu0 %v1414
          %1635 = vmatpush1.bf16.msra.mxu0 %v1413
          %1636 = vmatprep.subr.bf16.mxu0 %v1422
          %1637 = vmatpush1.bf16.msra.mxu0 %v1421
          %1638 = vmatprep.subr.bf16.mxu0 %v1430
          %1639 = vmatpush1.bf16.msra.mxu0 %v1429
          %1640 = vmatprep.subr.bf16.mxu0 %v1438
          %1641 = vmatpush1.bf16.msra.mxu0 %v1437
          %1642 = vmatprep.subr.bf16.mxu0 %v1446
          %1643 = vmatpush1.bf16.msra.mxu0 %v1445
          %1644 = vmatprep.subr.bf16.mxu0 0
          %1645 = vmatpush1.bf16.msra.mxu0 0
          %1646 = vmatprep.subr.bf16.mxu0 0
          %1647 = vmatpush1.bf16.msra.mxu0 0
          %1648 = vmatprep.subr.bf16.mxu0 0
          %1649 = vmatpush1.bf16.msra.mxu0 0
          %1650 = vmatprep.subr.bf16.mxu0 0
          %1651 = vmatpush1.bf16.msra.mxu0 0
          %1652 = vmatprep.subr.bf16.mxu0 0
          %1653 = vmatpush1.bf16.msra.mxu0 0
          %1654 = vmatprep.subr.bf16.mxu0 0
          %1655 = vmatpush1.bf16.msra.mxu0 0
          %1656 = vmatprep.subr.bf16.mxu0 0
          %1657 = vmatpush1.bf16.msra.mxu0 0
          %1658 = vmatprep.subr.bf16.mxu0 0
          %1659 = vmatpush1.bf16.msra.mxu0 0
          %1660 = vmatprep.mubr.bf16.mxu0 0
          %1661 = vmatmul.mubr.bf16.gmra.mrb[0].mxu0 %v1081
          %v1662 = vpop.f32.mrb[0].mxu0
          %v1663 = vadd.f32 %v1166, %v1662
          %v1664 = vpop.f32.mrb[0].mxu0
          %v1665 = vadd.f32 %v1170, %v1664
          %v1666 = vpop.f32.mrb[0].mxu0
          %v1667 = vadd.f32 %v1166, %v1666
          %v1668 = vpop.f32.mrb[0].mxu0
          %v1669 = vadd.f32 %v1170, %v1668
          %1670 = vmatprep.mubr.bf16.mxu0 0
          %1671 = vmatmul.mubr.bf16.gmra.mrb[0].mxu0 %v1082
          %v1672 = vpop.f32.mrb[0].mxu0
          %v1673 = vadd.f32 %v1166, %v1672
          %v1674 = vpop.f32.mrb[0].mxu0
          %v1675 = vadd.f32 %v1170, %v1674
          %v1676 = vpop.f32.mrb[0].mxu0
          %v1677 = vadd.f32 %v1166, %v1676
          %v1678 = vpop.f32.mrb[0].mxu0
          %v1679 = vadd.f32 %v1170, %v1678
          %1680 = vmatprep.mubr.bf16.mxu0 0
          %1681 = vmatmul.mubr.bf16.gmra.mrb[0].mxu0 %v1083
          %v1682 = vpop.f32.mrb[0].mxu0
          %v1683 = vadd.f32 %v1166, %v1682
          %v1684 = vpop.f32.mrb[0].mxu0
          %v1685 = vadd.f32 %v1170, %v1684
          %v1686 = vpop.f32.mrb[0].mxu0
          %v1687 = vadd.f32 %v1166, %v1686
          %v1688 = vpop.f32.mrb[0].mxu0
          %v1689 = vadd.f32 %v1170, %v1688
          %1690 = vmatprep.mubr.bf16.mxu0 0
          %1691 = vmatmul.mubr.bf16.gmra.mrb[0].mxu0 %v1084
          %v1692 = vpop.f32.mrb[0].mxu0
          %v1693 = vadd.f32 %v1166, %v1692
          %v1694 = vpop.f32.mrb[0].mxu0
          %v1695 = vadd.f32 %v1170, %v1694
          %v1696 = vpop.f32.mrb[0].mxu0
          %v1697 = vadd.f32 %v1166, %v1696
          %v1698 = vpop.f32.mrb[0].mxu0
          %v1699 = vadd.f32 %v1170, %v1698
          %1700 = vmatprep.mubr.bf16.mxu0 0
          %1701 = vmatmul.mubr.bf16.gmra.mrb[0].mxu0 %v1085
          %v1702 = vpop.f32.mrb[0].mxu0
          %v1703 = vadd.f32 %v1166, %v1702
          %v1704 = vpop.f32.mrb[0].mxu0
          %v1705 = vadd.f32 %v1170, %v1704
          %v1706 = vpop.f32.mrb[0].mxu0
          %v1707 = vadd.f32 %v1166, %v1706
          %v1708 = vpop.f32.mrb[0].mxu0
          %v1709 = vadd.f32 %v1170, %v1708
          %1710 = vmatprep.mubr.bf16.mxu0 0
          %1711 = vmatmul.mubr.bf16.gmra.mrb[0].mxu0 %v1086
          %v1712 = vpop.f32.mrb[0].mxu0
          %v1713 = vadd.f32 %v1166, %v1712
          %v1714 = vpop.f32.mrb[0].mxu0
          %v1715 = vadd.f32 %v1170, %v1714
          %v1716 = vpop.f32.mrb[0].mxu0
          %v1717 = vadd.f32 %v1166, %v1716
          %v1718 = vpop.f32.mrb[0].mxu0
          %v1719 = vadd.f32 %v1170, %v1718
          %1720 = vmatprep.mubr.bf16.mxu0 0
          %1721 = vmatmul.mubr.bf16.gmra.mrb[0].mxu0 %v1087
          %v1722 = vpop.f32.mrb[0].mxu0
          %v1723 = vadd.f32 %v1166, %v1722
          %v1724 = vpop.f32.mrb[0].mxu0
          %v1725 = vadd.f32 %v1170, %v1724
          %v1726 = vpop.f32.mrb[0].mxu0
          %v1727 = vadd.f32 %v1166, %v1726
          %v1728 = vpop.f32.mrb[0].mxu0
          %v1729 = vadd.f32 %v1170, %v1728
          %1730 = vmatprep.mubr.bf16.mxu0 0
          %1731 = vmatmul.mubr.bf16.gmra.mrb[0].mxu0 %v1088
          %v1732 = vpop.f32.mrb[0].mxu0
          %v1733 = vadd.f32 %v1166, %v1732
          %v1734 = vpop.f32.mrb[0].mxu0
          %v1735 = vadd.f32 %v1170, %v1734
          %v1736 = vpop.f32.mrb[0].mxu0
          %v1737 = vadd.f32 %v1166, %v1736
          %v1738 = vpop.f32.mrb[0].mxu0
          %v1739 = vadd.f32 %v1170, %v1738
          %1740 = vdwg.mxu0
          %1741 = vmatprep.subr.bf16.mxu0 %v1392
          %1742 = vmatpush1.bf16.msra.mxu0 %v1391
          %1743 = vmatprep.subr.bf16.mxu0 %v1400
          %1744 = vmatpush1.bf16.msra.mxu0 %v1399
          %1745 = vmatprep.subr.bf16.mxu0 %v1408
          %1746 = vmatpush1.bf16.msra.mxu0 %v1407
          %1747 = vmatprep.subr.bf16.mxu0 %v1416
          %1748 = vmatpush1.bf16.msra.mxu0 %v1415
          %1749 = vmatprep.subr.bf16.mxu0 %v1424
          %1750 = vmatpush1.bf16.msra.mxu0 %v1423
          %1751 = vmatprep.subr.bf16.mxu0 %v1432
          %1752 = vmatpush1.bf16.msra.mxu0 %v1431
          %1753 = vmatprep.subr.bf16.mxu0 %v1440
          %1754 = vmatpush1.bf16.msra.mxu0 %v1439
          %1755 = vmatprep.subr.bf16.mxu0 %v1448
          %1756 = vmatpush1.bf16.msra.mxu0 %v1447
          %1757 = vmatprep.subr.bf16.mxu0 0
          %1758 = vmatpush1.bf16.msra.mxu0 0
          %1759 = vmatprep.subr.bf16.mxu0 0
          %1760 = vmatpush1.bf16.msra.mxu0 0
          %1761 = vmatprep.subr.bf16.mxu0 0
          %1762 = vmatpush1.bf16.msra.mxu0 0
          %1763 = vmatprep.subr.bf16.mxu0 0
          %1764 = vmatpush1.bf16.msra.mxu0 0
          %1765 = vmatprep.subr.bf16.mxu0 0
          %1766 = vmatpush1.bf16.msra.mxu0 0
          %1767 = vmatprep.subr.bf16.mxu0 0
          %1768 = vmatpush1.bf16.msra.mxu0 0
          %1769 = vmatprep.subr.bf16.mxu0 0
          %1770 = vmatpush1.bf16.msra.mxu0 0
          %1771 = vmatprep.subr.bf16.mxu0 0
          %1772 = vmatpush1.bf16.msra.mxu0 0
          %1773 = vmatprep.mubr.bf16.mxu0 0
          %1774 = vmatmul.mubr.bf16.gmra.mrb[0].mxu0 %v1081
          %v1775 = vpop.f32.mrb[0].mxu0
          %v1776 = vadd.f32 %v1174, %v1775
          %v1777 = vpop.f32.mrb[0].mxu0
          %v1778 = vadd.f32 %v1178, %v1777
          %v1779 = vpop.f32.mrb[0].mxu0
          %v1780 = vadd.f32 %v1174, %v1779
          %v1781 = vpop.f32.mrb[0].mxu0
          %v1782 = vadd.f32 %v1178, %v1781
          %1783 = vmatprep.mubr.bf16.mxu0 0
          %1784 = vmatmul.mubr.bf16.gmra.mrb[0].mxu0 %v1082
          %v1785 = vpop.f32.mrb[0].mxu0
          %v1786 = vadd.f32 %v1174, %v1785
          %v1787 = vpop.f32.mrb[0].mxu0
          %v1788 = vadd.f32 %v1178, %v1787
          %v1789 = vpop.f32.mrb[0].mxu0
          %v1790 = vadd.f32 %v1174, %v1789
          %v1791 = vpop.f32.mrb[0].mxu0
          %v1792 = vadd.f32 %v1178, %v1791
          %1793 = vmatprep.mubr.bf16.mxu0 0
          %1794 = vmatmul.mubr.bf16.gmra.mrb[0].mxu0 %v1083
          %v1795 = vpop.f32.mrb[0].mxu0
          %v1796 = vadd.f32 %v1174, %v1795
          %v1797 = vpop.f32.mrb[0].mxu0
          %v1798 = vadd.f32 %v1178, %v1797
          %v1799 = vpop.f32.mrb[0].mxu0
          %v1800 = vadd.f32 %v1174, %v1799
          %v1801 = vpop.f32.mrb[0].mxu0
          %v1802 = vadd.f32 %v1178, %v1801
          %1803 = vmatprep.mubr.bf16.mxu0 0
          %1804 = vmatmul.mubr.bf16.gmra.mrb[0].mxu0 %v1084
          %v1805 = vpop.f32.mrb[0].mxu0
          %v1806 = vadd.f32 %v1174, %v1805
          %v1807 = vpop.f32.mrb[0].mxu0
          %v1808 = vadd.f32 %v1178, %v1807
          %v1809 = vpop.f32.mrb[0].mxu0
          %v1810 = vadd.f32 %v1174, %v1809
          %v1811 = vpop.f32.mrb[0].mxu0
          %v1812 = vadd.f32 %v1178, %v1811
          %1813 = vmatprep.mubr.bf16.mxu0 0
          %1814 = vmatmul.mubr.bf16.gmra.mrb[0].mxu0 %v1085
          %v1815 = vpop.f32.mrb[0].mxu0
          %v1816 = vadd.f32 %v1174, %v1815
          %v1817 = vpop.f32.mrb[0].mxu0
          %v1818 = vadd.f32 %v1178, %v1817
          %v1819 = vpop.f32.mrb[0].mxu0
          %v1820 = vadd.f32 %v1174, %v1819
          %v1821 = vpop.f32.mrb[0].mxu0
          %v1822 = vadd.f32 %v1178, %v1821
          %1823 = vmatprep.mubr.bf16.mxu0 0
          %1824 = vmatmul.mubr.bf16.gmra.mrb[0].mxu0 %v1086
          %v1825 = vpop.f32.mrb[0].mxu0
          %v1826 = vadd.f32 %v1174, %v1825
          %v1827 = vpop.f32.mrb[0].mxu0
          %v1828 = vadd.f32 %v1178, %v1827
          %v1829 = vpop.f32.mrb[0].mxu0
          %v1830 = vadd.f32 %v1174, %v1829
          %v1831 = vpop.f32.mrb[0].mxu0
          %v1832 = vadd.f32 %v1178, %v1831
          %1833 = vmatprep.mubr.bf16.mxu0 0
          %1834 = vmatmul.mubr.bf16.gmra.mrb[0].mxu0 %v1087
          %v1835 = vpop.f32.mrb[0].mxu0
          %v1836 = vadd.f32 %v1174, %v1835
          %v1837 = vpop.f32.mrb[0].mxu0
          %v1838 = vadd.f32 %v1178, %v1837
          %v1839 = vpop.f32.mrb[0].mxu0
          %v1840 = vadd.f32 %v1174, %v1839
          %v1841 = vpop.f32.mrb[0].mxu0
          %v1842 = vadd.f32 %v1178, %v1841
          %1843 = vmatprep.mubr.bf16.mxu0 0
          %1844 = vmatmul.mubr.bf16.gmra.mrb[0].mxu0 %v1088
          %v1845 = vpop.f32.mrb[0].mxu0
          %v1846 = vadd.f32 %v1174, %v1845
          %v1847 = vpop.f32.mrb[0].mxu0
          %v1848 = vadd.f32 %v1178, %v1847
          %v1849 = vpop.f32.mrb[0].mxu0
          %v1850 = vadd.f32 %v1174, %v1849
          %v1851 = vpop.f32.mrb[0].mxu0
          %v1852 = vadd.f32 %v1178, %v1851
          %1853 = vdwg.mxu0
          %1854 = vmatprep.subr.bf16.mxu0 %v1394
          %1855 = vmatpush1.bf16.msra.mxu0 %v1393
          %1856 = vmatprep.subr.bf16.mxu0 %v1402
          %1857 = vmatpush1.bf16.msra.mxu0 %v1401
          %1858 = vmatprep.subr.bf16.mxu0 %v1410
          %1859 = vmatpush1.bf16.msra.mxu0 %v1409
          %1860 = vmatprep.subr.bf16.mxu0 %v1418
          %1861 = vmatpush1.bf16.msra.mxu0 %v1417
          %1862 = vmatprep.subr.bf16.mxu0 %v1426
          %1863 = vmatpush1.bf16.msra.mxu0 %v1425
          %1864 = vmatprep.subr.bf16.mxu0 %v1434
          %1865 = vmatpush1.bf16.msra.mxu0 %v1433
          %1866 = vmatprep.subr.bf16.mxu0 %v1442
          %1867 = vmatpush1.bf16.msra.mxu0 %v1441
          %1868 = vmatprep.subr.bf16.mxu0 %v1450
          %1869 = vmatpush1.bf16.msra.mxu0 %v1449
          %1870 = vmatprep.subr.bf16.mxu0 0
          %1871 = vmatpush1.bf16.msra.mxu0 0
          %1872 = vmatprep.subr.bf16.mxu0 0
          %1873 = vmatpush1.bf16.msra.mxu0 0
          %1874 = vmatprep.subr.bf16.mxu0 0
          %1875 = vmatpush1.bf16.msra.mxu0 0
          %1876 = vmatprep.subr.bf16.mxu0 0
          %1877 = vmatpush1.bf16.msra.mxu0 0
          %1878 = vmatprep.subr.bf16.mxu0 0
          %1879 = vmatpush1.bf16.msra.mxu0 0
          %1880 = vmatprep.subr.bf16.mxu0 0
          %1881 = vmatpush1.bf16.msra.mxu0 0
          %1882 = vmatprep.subr.bf16.mxu0 0
          %1883 = vmatpush1.bf16.msra.mxu0 0
          %1884 = vmatprep.subr.bf16.mxu0 0
          %1885 = vmatpush1.bf16.msra.mxu0 0
          %1886 = vmatprep.mubr.bf16.mxu0 0
          %1887 = vmatmul.mubr.bf16.gmra.mrb[0].mxu0 %v1081
          %v1888 = vpop.f32.mrb[0].mxu0
          %v1889 = vadd.f32 %v1182, %v1888
          %v1890 = vpop.f32.mrb[0].mxu0
          %v1891 = vadd.f32 %v1186, %v1890
          %v1892 = vpop.f32.mrb[0].mxu0
          %v1893 = vadd.f32 %v1182, %v1892
          %v1894 = vpop.f32.mrb[0].mxu0
          %v1895 = vadd.f32 %v1186, %v1894
          %1896 = vmatprep.mubr.bf16.mxu0 0
          %1897 = vmatmul.mubr.bf16.gmra.mrb[0].mxu0 %v1082
          %v1898 = vpop.f32.mrb[0].mxu0
          %v1899 = vadd.f32 %v1182, %v1898
          %v1900 = vpop.f32.mrb[0].mxu0
          %v1901 = vadd.f32 %v1186, %v1900
          %v1902 = vpop.f32.mrb[0].mxu0
          %v1903 = vadd.f32 %v1182, %v1902
          %v1904 = vpop.f32.mrb[0].mxu0
          %v1905 = vadd.f32 %v1186, %v1904
          %1906 = vmatprep.mubr.bf16.mxu0 0
          %1907 = vmatmul.mubr.bf16.gmra.mrb[0].mxu0 %v1083
          %v1908 = vpop.f32.mrb[0].mxu0
          %v1909 = vadd.f32 %v1182, %v1908
          %v1910 = vpop.f32.mrb[0].mxu0
          %v1911 = vadd.f32 %v1186, %v1910
          %v1912 = vpop.f32.mrb[0].mxu0
          %v1913 = vadd.f32 %v1182, %v1912
          %v1914 = vpop.f32.mrb[0].mxu0
          %v1915 = vadd.f32 %v1186, %v1914
          %1916 = vmatprep.mubr.bf16.mxu0 0
          %1917 = vmatmul.mubr.bf16.gmra.mrb[0].mxu0 %v1084
          %v1918 = vpop.f32.mrb[0].mxu0
          %v1919 = vadd.f32 %v1182, %v1918
          %v1920 = vpop.f32.mrb[0].mxu0
          %v1921 = vadd.f32 %v1186, %v1920
          %v1922 = vpop.f32.mrb[0].mxu0
          %v1923 = vadd.f32 %v1182, %v1922
          %v1924 = vpop.f32.mrb[0].mxu0
          %v1925 = vadd.f32 %v1186, %v1924
          %1926 = vmatprep.mubr.bf16.mxu0 0
          %1927 = vmatmul.mubr.bf16.gmra.mrb[0].mxu0 %v1085
          %v1928 = vpop.f32.mrb[0].mxu0
          %v1929 = vadd.f32 %v1182, %v1928
          %v1930 = vpop.f32.mrb[0].mxu0
          %v1931 = vadd.f32 %v1186, %v1930
          %v1932 = vpop.f32.mrb[0].mxu0
          %v1933 = vadd.f32 %v1182, %v1932
          %v1934 = vpop.f32.mrb[0].mxu0
          %v1935 = vadd.f32 %v1186, %v1934
          %1936 = vmatprep.mubr.bf16.mxu0 0
          %1937 = vmatmul.mubr.bf16.gmra.mrb[0].mxu0 %v1086
          %v1938 = vpop.f32.mrb[0].mxu0
          %v1939 = vadd.f32 %v1182, %v1938
          %v1940 = vpop.f32.mrb[0].mxu0
          %v1941 = vadd.f32 %v1186, %v1940
          %v1942 = vpop.f32.mrb[0].mxu0
          %v1943 = vadd.f32 %v1182, %v1942
          %v1944 = vpop.f32.mrb[0].mxu0
          %v1945 = vadd.f32 %v1186, %v1944
          %1946 = vmatprep.mubr.bf16.mxu0 0
          %1947 = vmatmul.mubr.bf16.gmra.mrb[0].mxu0 %v1087
          %v1948 = vpop.f32.mrb[0].mxu0
          %v1949 = vadd.f32 %v1182, %v1948
          %v1950 = vpop.f32.mrb[0].mxu0
          %v1951 = vadd.f32 %v1186, %v1950
          %v1952 = vpop.f32.mrb[0].mxu0
          %v1953 = vadd.f32 %v1182, %v1952
          %v1954 = vpop.f32.mrb[0].mxu0
          %v1955 = vadd.f32 %v1186, %v1954
          %1956 = vmatprep.mubr.bf16.mxu0 0
          %1957 = vmatmul.mubr.bf16.gmra.mrb[0].mxu0 %v1088
          %v1958 = vpop.f32.mrb[0].mxu0
          %v1959 = vadd.f32 %v1182, %v1958
          %v1960 = vpop.f32.mrb[0].mxu0
          %v1961 = vadd.f32 %v1186, %v1960
          %v1962 = vpop.f32.mrb[0].mxu0
          %v1963 = vadd.f32 %v1182, %v1962
          %v1964 = vpop.f32.mrb[0].mxu0
          %v1965 = vadd.f32 %v1186, %v1964
          %1966 = vdwg.mxu0
          %1967 = vst [vmem:[#allocation9] sm:$0xff] %v1550
          %1968 = vst [vmem:[#allocation9 + $0x8] sm:$0xff] %v1552
          %1969 = vst [vmem:[#allocation9 + $0x10] sm:$0xff] %v1663
          %1970 = vst [vmem:[#allocation9 + $0x18] sm:$0xff] %v1665
          %1971 = vst [vmem:[#allocation9 + $0x20] sm:$0xff] %v1776
          %1972 = vst [vmem:[#allocation9 + $0x28] sm:$0xff] %v1778
          %1973 = vst [vmem:[#allocation9 + $0x30] sm:$0xff] %v1889
          %1974 = vst [vmem:[#allocation9 + $0x38] sm:$0xff] %v1891
          %1975 = vst [vmem:[#allocation9 + $0x40] sm:$0xff] %v1554
          %1976 = vst [vmem:[#allocation9 + $0x48] sm:$0xff] %v1556
          %1977 = vst [vmem:[#allocation9 + $0x50] sm:$0xff] %v1667
          %1978 = vst [vmem:[#allocation9 + $0x58] sm:$0xff] %v1669
          %1979 = vst [vmem:[#allocation9 + $0x60] sm:$0xff] %v1780
          %1980 = vst [vmem:[#allocation9 + $0x68] sm:$0xff] %v1782
          %1981 = vst [vmem:[#allocation9 + $0x70] sm:$0xff] %v1893
          %1982 = vst [vmem:[#allocation9 + $0x78] sm:$0xff] %v1895
          %1983 = vst [vmem:[#allocation9 + $0x80] sm:$0xff] %v1560
          %1984 = vst [vmem:[#allocation9 + $0x88] sm:$0xff] %v1562
          %1985 = vst [vmem:[#allocation9 + $0x90] sm:$0xff] %v1673
          %1986 = vst [vmem:[#allocation9 + $0x98] sm:$0xff] %v1675
          %1987 = vst [vmem:[#allocation9 + $0xa0] sm:$0xff] %v1786
          %1988 = vst [vmem:[#allocation9 + $0xa8] sm:$0xff] %v1788
          %1989 = vst [vmem:[#allocation9 + $0xb0] sm:$0xff] %v1899
          %1990 = vst [vmem:[#allocation9 + $0xb8] sm:$0xff] %v1901
          %1991 = vst [vmem:[#allocation9 + $0xc0] sm:$0xff] %v1564
          %1992 = vst [vmem:[#allocation9 + $0xc8] sm:$0xff] %v1566
          %1993 = vst [vmem:[#allocation9 + $0xd0] sm:$0xff] %v1677
          %1994 = vst [vmem:[#allocation9 + $0xd8] sm:$0xff] %v1679
          %1995 = vst [vmem:[#allocation9 + $0xe0] sm:$0xff] %v1790
          %1996 = vst [vmem:[#allocation9 + $0xe8] sm:$0xff] %v1792
          %1997 = vst [vmem:[#allocation9 + $0xf0] sm:$0xff] %v1903
          %1998 = vst [vmem:[#allocation9 + $0xf8] sm:$0xff] %v1905
          %1999 = vst [vmem:[#allocation9 + $0x100] sm:$0xff] %v1570
          %2000 = vst [vmem:[#allocation9 + $0x108] sm:$0xff] %v1572
          %2001 = vst [vmem:[#allocation9 + $0x110] sm:$0xff] %v1683
          %2002 = vst [vmem:[#allocation9 + $0x118] sm:$0xff] %v1685
          %2003 = vst [vmem:[#allocation9 + $0x120] sm:$0xff] %v1796
          %2004 = vst [vmem:[#allocation9 + $0x128] sm:$0xff] %v1798
          %2005 = vst [vmem:[#allocation9 + $0x130] sm:$0xff] %v1909
          %2006 = vst [vmem:[#allocation9 + $0x138] sm:$0xff] %v1911
          %2007 = vst [vmem:[#allocation9 + $0x140] sm:$0xff] %v1574
          %2008 = vst [vmem:[#allocation9 + $0x148] sm:$0xff] %v1576
          %2009 = vst [vmem:[#allocation9 + $0x150] sm:$0xff] %v1687
          %2010 = vst [vmem:[#allocation9 + $0x158] sm:$0xff] %v1689
          %2011 = vst [vmem:[#allocation9 + $0x160] sm:$0xff] %v1800
          %2012 = vst [vmem:[#allocation9 + $0x168] sm:$0xff] %v1802
          %2013 = vst [vmem:[#allocation9 + $0x170] sm:$0xff] %v1913
          %2014 = vst [vmem:[#allocation9 + $0x178] sm:$0xff] %v1915
          %2015 = vst [vmem:[#allocation9 + $0x180] sm:$0xff] %v1580
          %2016 = vst [vmem:[#allocation9 + $0x188] sm:$0xff] %v1582
          %2017 = vst [vmem:[#allocation9 + $0x190] sm:$0xff] %v1693
          %2018 = vst [vmem:[#allocation9 + $0x198] sm:$0xff] %v1695
          %2019 = vst [vmem:[#allocation9 + $0x1a0] sm:$0xff] %v1806
          %2020 = vst [vmem:[#allocation9 + $0x1a8] sm:$0xff] %v1808
          %2021 = vst [vmem:[#allocation9 + $0x1b0] sm:$0xff] %v1919
          %2022 = vst [vmem:[#allocation9 + $0x1b8] sm:$0xff] %v1921
          %2023 = vst [vmem:[#allocation9 + $0x1c0] sm:$0xff] %v1584
          %2024 = vst [vmem:[#allocation9 + $0x1c8] sm:$0xff] %v1586
          %2025 = vst [vmem:[#allocation9 + $0x1d0] sm:$0xff] %v1697
          %2026 = vst [vmem:[#allocation9 + $0x1d8] sm:$0xff] %v1699
          %2027 = vst [vmem:[#allocation9 + $0x1e0] sm:$0xff] %v1810
          %2028 = vst [vmem:[#allocation9 + $0x1e8] sm:$0xff] %v1812
          %2029 = vst [vmem:[#allocation9 + $0x1f0] sm:$0xff] %v1923
          %2030 = vst [vmem:[#allocation9 + $0x1f8] sm:$0xff] %v1925
          %2031 = vst [vmem:[#allocation9 + $0x200] sm:$0xff] %v1590
          %2032 = vst [vmem:[#allocation9 + $0x208] sm:$0xff] %v1592
          %2033 = vst [vmem:[#allocation9 + $0x210] sm:$0xff] %v1703
          %2034 = vst [vmem:[#allocation9 + $0x218] sm:$0xff] %v1705
          %2035 = vst [vmem:[#allocation9 + $0x220] sm:$0xff] %v1816
          %2036 = vst [vmem:[#allocation9 + $0x228] sm:$0xff] %v1818
          %2037 = vst [vmem:[#allocation9 + $0x230] sm:$0xff] %v1929
          %2038 = vst [vmem:[#allocation9 + $0x238] sm:$0xff] %v1931
          %2039 = vst [vmem:[#allocation9 + $0x240] sm:$0xff] %v1594
          %2040 = vst [vmem:[#allocation9 + $0x248] sm:$0xff] %v1596
          %2041 = vst [vmem:[#allocation9 + $0x250] sm:$0xff] %v1707
          %2042 = vst [vmem:[#allocation9 + $0x258] sm:$0xff] %v1709
          %2043 = vst [vmem:[#allocation9 + $0x260] sm:$0xff] %v1820
          %2044 = vst [vmem:[#allocation9 + $0x268] sm:$0xff] %v1822
          %2045 = vst [vmem:[#allocation9 + $0x270] sm:$0xff] %v1933
          %2046 = vst [vmem:[#allocation9 + $0x278] sm:$0xff] %v1935
          %2047 = vst [vmem:[#allocation9 + $0x280] sm:$0xff] %v1600
          %2048 = vst [vmem:[#allocation9 + $0x288] sm:$0xff] %v1602
          %2049 = vst [vmem:[#allocation9 + $0x290] sm:$0xff] %v1713
          %2050 = vst [vmem:[#allocation9 + $0x298] sm:$0xff] %v1715
          %2051 = vst [vmem:[#allocation9 + $0x2a0] sm:$0xff] %v1826
          %2052 = vst [vmem:[#allocation9 + $0x2a8] sm:$0xff] %v1828
          %2053 = vst [vmem:[#allocation9 + $0x2b0] sm:$0xff] %v1939
          %2054 = vst [vmem:[#allocation9 + $0x2b8] sm:$0xff] %v1941
          %2055 = vst [vmem:[#allocation9 + $0x2c0] sm:$0xff] %v1604
          %2056 = vst [vmem:[#allocation9 + $0x2c8] sm:$0xff] %v1606
          %2057 = vst [vmem:[#allocation9 + $0x2d0] sm:$0xff] %v1717
          %2058 = vst [vmem:[#allocation9 + $0x2d8] sm:$0xff] %v1719
          %2059 = vst [vmem:[#allocation9 + $0x2e0] sm:$0xff] %v1830
          %2060 = vst [vmem:[#allocation9 + $0x2e8] sm:$0xff] %v1832
          %2061 = vst [vmem:[#allocation9 + $0x2f0] sm:$0xff] %v1943
          %2062 = vst [vmem:[#allocation9 + $0x2f8] sm:$0xff] %v1945
          %2063 = vst [vmem:[#allocation9 + $0x300] sm:$0xff] %v1610
          %2064 = vst [vmem:[#allocation9 + $0x308] sm:$0xff] %v1612
          %2065 = vst [vmem:[#allocation9 + $0x310] sm:$0xff] %v1723
          %2066 = vst [vmem:[#allocation9 + $0x318] sm:$0xff] %v1725
          %2067 = vst [vmem:[#allocation9 + $0x320] sm:$0xff] %v1836
          %2068 = vst [vmem:[#allocation9 + $0x328] sm:$0xff] %v1838
          %2069 = vst [vmem:[#allocation9 + $0x330] sm:$0xff] %v1949
          %2070 = vst [vmem:[#allocation9 + $0x338] sm:$0xff] %v1951
          %2071 = vst [vmem:[#allocation9 + $0x340] sm:$0xff] %v1614
          %2072 = vst [vmem:[#allocation9 + $0x348] sm:$0xff] %v1616
          %2073 = vst [vmem:[#allocation9 + $0x350] sm:$0xff] %v1727
          %2074 = vst [vmem:[#allocation9 + $0x358] sm:$0xff] %v1729
          %2075 = vst [vmem:[#allocation9 + $0x360] sm:$0xff] %v1840
          %2076 = vst [vmem:[#allocation9 + $0x368] sm:$0xff] %v1842
          %2077 = vst [vmem:[#allocation9 + $0x370] sm:$0xff] %v1953
          %2078 = vst [vmem:[#allocation9 + $0x378] sm:$0xff] %v1955
          %2079 = vst [vmem:[#allocation9 + $0x380] sm:$0xff] %v1620
          %2080 = vst [vmem:[#allocation9 + $0x388] sm:$0xff] %v1622
          %2081 = vst [vmem:[#allocation9 + $0x390] sm:$0xff] %v1733
          %2082 = vst [vmem:[#allocation9 + $0x398] sm:$0xff] %v1735
          %2083 = vst [vmem:[#allocation9 + $0x3a0] sm:$0xff] %v1846
          %2084 = vst [vmem:[#allocation9 + $0x3a8] sm:$0xff] %v1848
          %2085 = vst [vmem:[#allocation9 + $0x3b0] sm:$0xff] %v1959
          %2086 = vst [vmem:[#allocation9 + $0x3b8] sm:$0xff] %v1961
          %2087 = vst [vmem:[#allocation9 + $0x3c0] sm:$0xff] %v1624
          %2088 = vst [vmem:[#allocation9 + $0x3c8] sm:$0xff] %v1626
          %2089 = vst [vmem:[#allocation9 + $0x3d0] sm:$0xff] %v1737
          %2090 = vst [vmem:[#allocation9 + $0x3d8] sm:$0xff] %v1739
          %2091 = vst [vmem:[#allocation9 + $0x3e0] sm:$0xff] %v1850
          %2092 = vst [vmem:[#allocation9 + $0x3e8] sm:$0xff] %v1852
          %2093 = vst [vmem:[#allocation9 + $0x3f0] sm:$0xff] %v1963
          %2094 = vst [vmem:[#allocation9 + $0x3f8] sm:$0xff] %v1965
        $region60: #{tpu_custom_call.1} parent=39 // pred_fallthru
          _
        // Predicated region
        $region61: #{tpu_custom_call.1} parent=39 // pred_check
          %p2095 = pneg %p170
        $region62: #{tpu_custom_call.1} parent=39 // pred_check_branch
          %2097 = sbr.rel (%p2095) target = $region64
        $region63: #{tpu_custom_call.1} parent=39 // pred_region
          %s2098 = smul.u32 16, %s27
          %s2100 = ssub.s32 16384, 16384
          %2101 = vsyncadd [#allocation5], %s2100
          %s2102 = smul.addr %s2098, 8
          %s2103 = smul.addr %s2102, 128
          %s2104 = scalar_lea.hbm %s5, %s2103
          %s2105 = sshll.u32 [#allocation9], 4
          %s2106 = int_to_ptr.vmem [resolvable:$true] %s2105
          %2111 = dma.vmem_to_hbm [thread:$0]  %s2106, 16384, %s2104, [#allocation5], 1024, 1024, 64
        $region64: #{tpu_custom_call.1} parent=39 // pred_fallthru
          _
        // Predicated region
        $region65: #{tpu_custom_call.1} parent=39 // pred_check
          %p2112 = pneg %p170
        $region66: #{tpu_custom_call.1} parent=39 // pred_check_branch
          %2114 = sbr.rel (%p2112) target = $region68
        $region67: #{tpu_custom_call.1} parent=39 // pred_region
          %2115 = dma.done [#allocation5], 16384
        $region68: #{tpu_custom_call.1} parent=39 // pred_fallthru
          _
      $region40: #{tpu_custom_call.1} parent=5 // pred_fallthru
        _
      %p2116 = scmp.le.s32.totalorder 2, %s18
      // Predicated region
      $region69: #{tpu_custom_call.1} parent=5 // pred_check
        %p2117 = pneg %p2116
      $region70: #{tpu_custom_call.1} parent=5 // pred_check_branch
        %2119 = sbr.rel (%p2117) target = $region72
      $region71: #{tpu_custom_call.1} parent=5 // pred_region
        %s2120 = ssub.s32 %s18, 2
      $region72: #{tpu_custom_call.1} parent=5 // pred_fallthru
        _
    $region6: #{tpu_custom_call.1} parent=1 // loop_footer
      %s22 = sadd.s32 1, %s18
    $region7: #{tpu_custom_call.1} parent=1 // loop_footer_branch
      %17 = sbr.rel target = $region3
    $region8: #{tpu_custom_call.1} parent=1 // loop_exit
      _
    %2121 = vsyncpa [#allocation4], 1
    %s2122 = scalar_lea.sflag [#allocation4], 1
    %2123 = vsyncpa %s2122, 1
    %2124 = vsyncpa [#allocation7], 1
    %s2125 = scalar_lea.sflag [#allocation7], 1
    %2126 = vsyncpa %s2125, 1
    %2127 = vsyncpa [#allocation5], 1
    %s2128 = scalar_lea.sflag [#allocation5], 1
    %2129 = vsyncpa %s2128, 1

</llo_original>
